<compile_context>
chip_gen: v6e
topology: v6e:2x2x1
jax: 0.10.0
libtpu: 0.0.40
codegen_flags: <defaults>
</compile_context>

<pallas_src>
import functools

import jax
import jax.numpy as jnp
from jax.experimental import pallas as pl
from jax.experimental.pallas import tpu as pltpu

DIMS = [100, 250, 512, 250, 100]      # torch Linear sizes
PDIMS = [128, 256, 512, 256, 128]     # padded to 128-lane multiples
TILE_B_CAP = 512                      # v5e-safe cap; big enough for v6e/v7x


def _cdiv(a, b):
    return -(-a // b)


def _round_up(n, m):
    return _cdiv(n, m) * m


def _choose_tiling(batch):
    """Pick (tile_b, padded_batch): big tiles to amortize per-step overhead,
    even grid >= 2 for large B (v7x dual TensorCore), <16 rows padding/tile."""
    n_steps = _cdiv(batch, TILE_B_CAP)
    if n_steps == 1 and batch > 256:
        n_steps = 2                      # keep both v7x TensorCores busy
    if n_steps > 1 and n_steps % 2:
        n_steps += 1                     # even grid for the 2-TC split
    tile_b = _round_up(_cdiv(batch, n_steps), 16)
    padded_batch = _round_up(batch, tile_b)
    return tile_b, padded_batch


def mlp_kernel(x_ref, w1_ref, b1_ref, w2_ref, b2_ref,
               w3_ref, b3_ref, w4_ref, b4_ref, o_ref):
    """One (tile_b, 128) batch tile through the whole MLP.

    bf16 operands into the MXU, f32 accumulation / bias add / sigmoid.
    ReLU is fused with the bf16 downcast so inter-layer activations are bf16.
    """
    h = jnp.dot(x_ref[...], w1_ref[...],
                preferred_element_type=jnp.float32) + b1_ref[...]
    h = jnp.maximum(h, 0.0).astype(jnp.bfloat16)

    h = jnp.dot(h, w2_ref[...],
                preferred_element_type=jnp.float32) + b2_ref[...]
    h = jnp.maximum(h, 0.0).astype(jnp.bfloat16)

    h = jnp.dot(h, w3_ref[...],
                preferred_element_type=jnp.float32) + b3_ref[...]
    h = jnp.maximum(h, 0.0).astype(jnp.bfloat16)

    h = jnp.dot(h, w4_ref[...],
                preferred_element_type=jnp.float32) + b4_ref[...]
    o_ref[...] = jax.nn.sigmoid(h)


def prepare_params(params):
    """One-time (outside the jitted forward path) pad + cast of parameters.

    Weights: (in, out) -> zero-padded (in_p, out_p), cast to bf16.
    Biases:  (out,)    -> zero-padded (1, out_p), kept f32.
    Zero padding is exact: padded lanes/rows contribute exact zeros through
    every ReLU layer; padded lanes of the final output are sliced away.
    """
    padded = []
    for i in range(4):
        w = params[f"w{i+1}"]
        b = params[f"b{i+1}"]
        in_p, out_p = PDIMS[i], PDIMS[i + 1]
        wp = jnp.pad(w, ((0, in_p - w.shape[0]), (0, out_p - w.shape[1])))
        bp = jnp.pad(b[None, :], ((0, 0), (0, out_p - b.shape[0])))
        padded.append(wp.astype(jnp.bfloat16))
        padded.append(bp.astype(jnp.float32))
    return tuple(padded)


@functools.partial(jax.jit, static_argnames=("single_buffer_params",))
def _net_forward_impl(x, padded_params, single_buffer_params):
    B, d_in = x.shape
    assert d_in == DIMS[0]

    tile_b, bp = _choose_tiling(B)
    grid = (bp // tile_b,)

    # Cast first (halves the wrapper-side traffic), then one pad op:
    # rows to the tile multiple, features 100 -> 128.
    xp = jnp.pad(x.astype(jnp.bfloat16),
                 ((0, bp - B), (0, PDIMS[0] - d_in)))

    x_spec = pl.BlockSpec((tile_b, PDIMS[0]), lambda i: (i, 0))
    out_spec = pl.BlockSpec((tile_b, PDIMS[4]), lambda i: (i, 0))

    # Weights/biases: full block, constant index_map -> DMA'd once and
    # VMEM-resident across grid steps. Single-buffered when supported.
    def _param_spec(shape):
        if single_buffer_params:
            return pl.BlockSpec(shape, lambda i: (0, 0),
                                pipeline_mode=pl.Buffered(1))
        return pl.BlockSpec(shape, lambda i: (0, 0))

    param_specs = []
    for li in range(4):
        param_specs.append(_param_spec((PDIMS[li], PDIMS[li + 1])))
        param_specs.append(_param_spec((1, PDIMS[li + 1])))

    mm = sum(PDIMS[i] * PDIMS[i + 1] for i in range(4))
    cost = pl.CostEstimate(
        flops=2 * bp * mm,
        transcendentals=bp * PDIMS[4],
        bytes_accessed=(2 * bp * PDIMS[0]           # x (bf16)
                        + 2 * mm                    # weights (bf16)
                        + 4 * sum(PDIMS[1:])        # biases (f32)
                        + 4 * bp * PDIMS[4]))       # out (f32)

    out_padded = pl.pallas_call(
        mlp_kernel,
        out_shape=jax.ShapeDtypeStruct((bp, PDIMS[4]), jnp.float32),
        grid=grid,
        in_specs=[x_spec] + param_specs,
        out_specs=out_spec,
        compiler_params=pltpu.CompilerParams(
            dimension_semantics=("parallel",)),
        cost_estimate=cost,
    )(xp, *padded_params)

    return out_padded[:B, :DIMS[4]]


_SINGLE_BUFFER_OK = None


def net_forward(x, padded_params):
    """Forward pass. Tries single-buffered (constant-index) weight blocks
    first; falls back to default double-buffering if pl.Buffered(1) is not
    accepted by this Pallas build."""
    global _SINGLE_BUFFER_OK
    if _SINGLE_BUFFER_OK is None:
        try:
            out = jax.block_until_ready(
                _net_forward_impl(x, padded_params, single_buffer_params=True))
            _SINGLE_BUFFER_OK = True
            return out
        except Exception:
            _SINGLE_BUFFER_OK = False
    return _net_forward_impl(x, padded_params,
                             single_buffer_params=_SINGLE_BUFFER_OK)


def init_params(key):
    """Deterministic init mimicking torch.nn.Linear (uniform +-1/sqrt(fan_in)).
    Weights stored as (in_features, out_features)."""
    params = {}
    for i in range(4):
        fan_in, fan_out = DIMS[i], DIMS[i + 1]
        key, kw, kb = jax.random.split(key, 3)
        bound = 1.0 / (fan_in ** 0.5)
        params[f"w{i+1}"] = jax.random.uniform(
            kw, (fan_in, fan_out), jnp.float32, -bound, bound)
        params[f"b{i+1}"] = jax.random.uniform(
            kb, (fan_out,), jnp.float32, -bound, bound)
    return params


def reference_forward(x, params):
    h = x
    for i in range(1, 4):
        h = jnp.maximum(h @ params[f"w{i}"] + params[f"b{i}"], 0.0)
    h = h @ params["w4"] + params["b4"]
    return jax.nn.sigmoid(h)


if __name__ == "__main__":
    key = jax.random.PRNGKey(0)
    kx, kx2, kp = jax.random.split(key, 3)

    params = init_params(kp)
    padded_params = prepare_params(params)     # one-time, outside forward path

    # Small batch: single grid step.
    x_small = jax.random.normal(kx, (4, 100), jnp.float32)
    out_small = jax.block_until_ready(net_forward(x_small, padded_params))
    ref_small = reference_forward(x_small, params)
    assert out_small.shape == (4, 100), out_small.shape
    # bf16 matmul inputs (f32 accumulation) -> small drift vs f32 reference.
    assert jnp.allclose(out_small, ref_small, atol=2e-2, rtol=0.0), (
        "small-batch mismatch: max abs diff "
        f"{float(jnp.max(jnp.abs(out_small - ref_small)))}")

    # Larger, non-tile-multiple batch: exercises the balanced 2-step grid
    # (B=300 -> tile_b=160, padded to 320, grid=(2,)).
    x_big = jax.random.normal(kx2, (300, 100), jnp.float32)
    out_big = jax.block_until_ready(net_forward(x_big, padded_params))
    ref_big = reference_forward(x_big, params)
    assert out_big.shape == (300, 100), out_big.shape
    assert jnp.allclose(out_big, ref_big, atol=3e-2, rtol=0.0), (
        "large-batch mismatch: max abs diff "
        f"{float(jnp.max(jnp.abs(out_big - ref_big)))}")

    print("KERNEL_OK")
</pallas_src>

<mosaic_0001>
module attributes {stable_mosaic.version = 11 : i64} {
  func.func @mlp_kernel(%arg0: i32, %arg1: memref<16x128xbf16, #tpu.memory_space<vmem>>, %arg2: memref<128x256xbf16, #tpu.memory_space<vmem>>, %arg3: memref<1x256xf32, #tpu.memory_space<vmem>>, %arg4: memref<256x512xbf16, #tpu.memory_space<vmem>>, %arg5: memref<1x512xf32, #tpu.memory_space<vmem>>, %arg6: memref<512x256xbf16, #tpu.memory_space<vmem>>, %arg7: memref<1x256xf32, #tpu.memory_space<vmem>>, %arg8: memref<256x128xbf16, #tpu.memory_space<vmem>>, %arg9: memref<1x128xf32, #tpu.memory_space<vmem>>, %arg10: memref<16x128xf32, #tpu.memory_space<vmem>>) attributes {dimension_semantics = [#tpu.dimension_semantics<parallel>], iteration_bounds = array<i64: 1>, scalar_prefetch = 0 : i64, scratch_operands = 0 : i64, tpu.core_type = #tpu.core_type<tc>, window_params = [{transform_indices = @transform_0, window_bounds = array<i64: 16, 128>}, {pipeline_mode = #tpu.pipeline_mode<synchronous>, transform_indices = @transform_1, window_bounds = array<i64: 128, 256>}, {pipeline_mode = #tpu.pipeline_mode<synchronous>, transform_indices = @transform_2, window_bounds = array<i64: 1, 256>}, {pipeline_mode = #tpu.pipeline_mode<synchronous>, transform_indices = @transform_3, window_bounds = array<i64: 256, 512>}, {pipeline_mode = #tpu.pipeline_mode<synchronous>, transform_indices = @transform_4, window_bounds = array<i64: 1, 512>}, {pipeline_mode = #tpu.pipeline_mode<synchronous>, transform_indices = @transform_5, window_bounds = array<i64: 512, 256>}, {pipeline_mode = #tpu.pipeline_mode<synchronous>, transform_indices = @transform_6, window_bounds = array<i64: 1, 256>}, {pipeline_mode = #tpu.pipeline_mode<synchronous>, transform_indices = @transform_7, window_bounds = array<i64: 256, 128>}, {pipeline_mode = #tpu.pipeline_mode<synchronous>, transform_indices = @transform_8, window_bounds = array<i64: 1, 128>}, {transform_indices = @transform_9, window_bounds = array<i64: 16, 128>}]} {
    %c0 = arith.constant 0 : index
    %c0_0 = arith.constant 0 : index
    %0 = vector.load %arg1[%c0, %c0_0] : memref<16x128xbf16, #tpu.memory_space<vmem>>, vector<16x128xbf16>
    %c0_1 = arith.constant 0 : index
    %c0_2 = arith.constant 0 : index
    %1 = vector.load %arg2[%c0_1, %c0_2] : memref<128x256xbf16, #tpu.memory_space<vmem>>, vector<128x256xbf16>
    %cst = arith.constant dense<0.000000e+00> : vector<16x256xf32>
    %2 = tpu.matmul %0, %1, %cst {dimension_numbers = #tpu.dot_dimension_numbers<[1], [0], [0], [1], [0, 0, 1, 1], [], []>} : vector<16x128xbf16>, vector<128x256xbf16>, vector<16x256xf32> -> vector<16x256xf32>
    %c0_3 = arith.constant 0 : index
    %c0_4 = arith.constant 0 : index
    %3 = vector.load %arg3[%c0_3, %c0_4] : memref<1x256xf32, #tpu.memory_space<vmem>>, vector<1x256xf32>
    %4 = vector.broadcast %3 : vector<1x256xf32> to vector<16x256xf32>
    %5 = arith.addf %2, %4 : vector<16x256xf32>
    %cst_5 = arith.constant 0.000000e+00 : f32
    %6 = vector.broadcast %cst_5 : f32 to vector<16x256xf32>
    %7 = arith.maximumf %5, %6 : vector<16x256xf32>
    %8 = arith.truncf %7 : vector<16x256xf32> to vector<16x256xbf16>
    %c0_6 = arith.constant 0 : index
    %c0_7 = arith.constant 0 : index
    %9 = vector.load %arg4[%c0_6, %c0_7] : memref<256x512xbf16, #tpu.memory_space<vmem>>, vector<256x512xbf16>
    %cst_8 = arith.constant dense<0.000000e+00> : vector<16x512xf32>
    %10 = tpu.matmul %8, %9, %cst_8 {dimension_numbers = #tpu.dot_dimension_numbers<[1], [0], [0], [1], [0, 0, 1, 1], [], []>} : vector<16x256xbf16>, vector<256x512xbf16>, vector<16x512xf32> -> vector<16x512xf32>
    %c0_9 = arith.constant 0 : index
    %c0_10 = arith.constant 0 : index
    %11 = vector.load %arg5[%c0_9, %c0_10] : memref<1x512xf32, #tpu.memory_space<vmem>>, vector<1x512xf32>
    %12 = vector.broadcast %11 : vector<1x512xf32> to vector<16x512xf32>
    %13 = arith.addf %10, %12 : vector<16x512xf32>
    %cst_11 = arith.constant 0.000000e+00 : f32
    %14 = vector.broadcast %cst_11 : f32 to vector<16x512xf32>
    %15 = arith.maximumf %13, %14 : vector<16x512xf32>
    %16 = arith.truncf %15 : vector<16x512xf32> to vector<16x512xbf16>
    %c0_12 = arith.constant 0 : index
    %c0_13 = arith.constant 0 : index
    %17 = vector.load %arg6[%c0_12, %c0_13] : memref<512x256xbf16, #tpu.memory_space<vmem>>, vector<512x256xbf16>
    %cst_14 = arith.constant dense<0.000000e+00> : vector<16x256xf32>
    %18 = tpu.matmul %16, %17, %cst_14 {dimension_numbers = #tpu.dot_dimension_numbers<[1], [0], [0], [1], [0, 0, 1, 1], [], []>} : vector<16x512xbf16>, vector<512x256xbf16>, vector<16x256xf32> -> vector<16x256xf32>
    %c0_15 = arith.constant 0 : index
    %c0_16 = arith.constant 0 : index
    %19 = vector.load %arg7[%c0_15, %c0_16] : memref<1x256xf32, #tpu.memory_space<vmem>>, vector<1x256xf32>
    %20 = vector.broadcast %19 : vector<1x256xf32> to vector<16x256xf32>
    %21 = arith.addf %18, %20 : vector<16x256xf32>
    %cst_17 = arith.constant 0.000000e+00 : f32
    %22 = vector.broadcast %cst_17 : f32 to vector<16x256xf32>
    %23 = arith.maximumf %21, %22 : vector<16x256xf32>
    %24 = arith.truncf %23 : vector<16x256xf32> to vector<16x256xbf16>
    %c0_18 = arith.constant 0 : index
    %c0_19 = arith.constant 0 : index
    %25 = vector.load %arg8[%c0_18, %c0_19] : memref<256x128xbf16, #tpu.memory_space<vmem>>, vector<256x128xbf16>
    %cst_20 = arith.constant dense<0.000000e+00> : vector<16x128xf32>
    %26 = tpu.matmul %24, %25, %cst_20 {dimension_numbers = #tpu.dot_dimension_numbers<[1], [0], [0], [1], [0, 0, 1, 1], [], []>} : vector<16x256xbf16>, vector<256x128xbf16>, vector<16x128xf32> -> vector<16x128xf32>
    %c0_21 = arith.constant 0 : index
    %c0_22 = arith.constant 0 : index
    %27 = vector.load %arg9[%c0_21, %c0_22] : memref<1x128xf32, #tpu.memory_space<vmem>>, vector<1x128xf32>
    %28 = vector.broadcast %27 : vector<1x128xf32> to vector<16x128xf32>
    %29 = arith.addf %26, %28 : vector<16x128xf32>
    %30 = arith.negf %29 : vector<16x128xf32>
    %31 = math.exp %30 : vector<16x128xf32>
    %cst_23 = arith.constant 1.000000e+00 : f32
    %32 = vector.broadcast %cst_23 : f32 to vector<16x128xf32>
    %33 = arith.addf %32, %31 : vector<16x128xf32>
    %34 = arith.divf %32, %33 : vector<16x128xf32>
    %c0_24 = arith.constant 0 : index
    %c0_25 = arith.constant 0 : index
    %35 = vector.load %arg10[%c0_24, %c0_25] : memref<16x128xf32, #tpu.memory_space<vmem>>, vector<16x128xf32>
    tpu.vector_store %arg10[%c0_24, %c0_25], %34 {strides = array<i32>} : memref<16x128xf32, #tpu.memory_space<vmem>>, vector<16x128xf32>,
    return
  }
  func.func @transform_0(%arg0: i32) -> (i32, i32) {
    %c0_i32 = arith.constant 0 : i32
    %c0_i32_0 = arith.constant 0 : i32
    return %arg0, %c0_i32 : i32, i32
  }
  func.func @transform_1(%arg0: i32) -> (i32, i32) {
    %c0_i32 = arith.constant 0 : i32
    %c0_i32_0 = arith.constant 0 : i32
    %c0_i32_1 = arith.constant 0 : i32
    return %c0_i32, %c0_i32_0 : i32, i32
  }
  func.func @transform_2(%arg0: i32) -> (i32, i32) {
    %c0_i32 = arith.constant 0 : i32
    %c0_i32_0 = arith.constant 0 : i32
    %c0_i32_1 = arith.constant 0 : i32
    return %c0_i32, %c0_i32_0 : i32, i32
  }
  func.func @transform_3(%arg0: i32) -> (i32, i32) {
    %c0_i32 = arith.constant 0 : i32
    %c0_i32_0 = arith.constant 0 : i32
    %c0_i32_1 = arith.constant 0 : i32
    return %c0_i32, %c0_i32_0 : i32, i32
  }
  func.func @transform_4(%arg0: i32) -> (i32, i32) {
    %c0_i32 = arith.constant 0 : i32
    %c0_i32_0 = arith.constant 0 : i32
    %c0_i32_1 = arith.constant 0 : i32
    return %c0_i32, %c0_i32_0 : i32, i32
  }
  func.func @transform_5(%arg0: i32) -> (i32, i32) {
    %c0_i32 = arith.constant 0 : i32
    %c0_i32_0 = arith.constant 0 : i32
    %c0_i32_1 = arith.constant 0 : i32
    return %c0_i32, %c0_i32_0 : i32, i32
  }
  func.func @transform_6(%arg0: i32) -> (i32, i32) {
    %c0_i32 = arith.constant 0 : i32
    %c0_i32_0 = arith.constant 0 : i32
    %c0_i32_1 = arith.constant 0 : i32
    return %c0_i32, %c0_i32_0 : i32, i32
  }
  func.func @transform_7(%arg0: i32) -> (i32, i32) {
    %c0_i32 = arith.constant 0 : i32
    %c0_i32_0 = arith.constant 0 : i32
    %c0_i32_1 = arith.constant 0 : i32
    return %c0_i32, %c0_i32_0 : i32, i32
  }
  func.func @transform_8(%arg0: i32) -> (i32, i32) {
    %c0_i32 = arith.constant 0 : i32
    %c0_i32_0 = arith.constant 0 : i32
    %c0_i32_1 = arith.constant 0 : i32
    return %c0_i32, %c0_i32_0 : i32, i32
  }
  func.func @transform_9(%arg0: i32) -> (i32, i32) {
    %c0_i32 = arith.constant 0 : i32
    %c0_i32_0 = arith.constant 0 : i32
    return %arg0, %c0_i32 : i32, i32
  }
}

module attributes {stable_mosaic.version = 11 : i64} {
  func.func @mlp_kernel(%arg0: i32, %arg1: memref<16x128xbf16, #tpu.memory_space<vmem>>, %arg2: memref<128x256xbf16, #tpu.memory_space<vmem>>, %arg3: memref<1x256xf32, #tpu.memory_space<vmem>>, %arg4: memref<256x512xbf16, #tpu.memory_space<vmem>>, %arg5: memref<1x512xf32, #tpu.memory_space<vmem>>, %arg6: memref<512x256xbf16, #tpu.memory_space<vmem>>, %arg7: memref<1x256xf32, #tpu.memory_space<vmem>>, %arg8: memref<256x128xbf16, #tpu.memory_space<vmem>>, %arg9: memref<1x128xf32, #tpu.memory_space<vmem>>, %arg10: memref<16x128xf32, #tpu.memory_space<vmem>>) attributes {dimension_semantics = [#tpu.dimension_semantics<parallel>], iteration_bounds = array<i64: 1>, scalar_prefetch = 0 : i64, scratch_operands = 0 : i64, tpu.core_type = #tpu.core_type<tc>, window_params = [{transform_indices = @transform_0, window_bounds = array<i64: 16, 128>}, {pipeline_mode = #tpu.pipeline_mode<synchronous>, transform_indices = @transform_1, window_bounds = array<i64: 128, 256>}, {pipeline_mode = #tpu.pipeline_mode<synchronous>, transform_indices = @transform_2, window_bounds = array<i64: 1, 256>}, {pipeline_mode = #tpu.pipeline_mode<synchronous>, transform_indices = @transform_3, window_bounds = array<i64: 256, 512>}, {pipeline_mode = #tpu.pipeline_mode<synchronous>, transform_indices = @transform_4, window_bounds = array<i64: 1, 512>}, {pipeline_mode = #tpu.pipeline_mode<synchronous>, transform_indices = @transform_5, window_bounds = array<i64: 512, 256>}, {pipeline_mode = #tpu.pipeline_mode<synchronous>, transform_indices = @transform_6, window_bounds = array<i64: 1, 256>}, {pipeline_mode = #tpu.pipeline_mode<synchronous>, transform_indices = @transform_7, window_bounds = array<i64: 256, 128>}, {pipeline_mode = #tpu.pipeline_mode<synchronous>, transform_indices = @transform_8, window_bounds = array<i64: 1, 128>}, {transform_indices = @transform_9, window_bounds = array<i64: 16, 128>}]} {
    %c0 = arith.constant 0 : index
    %c0_0 = arith.constant 0 : index
    %0 = vector.load %arg1[%c0, %c0_0] : memref<16x128xbf16, #tpu.memory_space<vmem>>, vector<16x128xbf16>
    %c0_1 = arith.constant 0 : index
    %c0_2 = arith.constant 0 : index
    %1 = vector.load %arg2[%c0_1, %c0_2] : memref<128x256xbf16, #tpu.memory_space<vmem>>, vector<128x256xbf16>
    %cst = arith.constant dense<0.000000e+00> : vector<16x256xf32>
    %2 = tpu.matmul %0, %1, %cst {dimension_numbers = #tpu.dot_dimension_numbers<[1], [0], [0], [1], [0, 0, 1, 1], [], []>} : vector<16x128xbf16>, vector<128x256xbf16>, vector<16x256xf32> -> vector<16x256xf32>
    %c0_3 = arith.constant 0 : index
    %c0_4 = arith.constant 0 : index
    %3 = vector.load %arg3[%c0_3, %c0_4] : memref<1x256xf32, #tpu.memory_space<vmem>>, vector<1x256xf32>
    %4 = vector.broadcast %3 : vector<1x256xf32> to vector<16x256xf32>
    %5 = arith.addf %2, %4 : vector<16x256xf32>
    %cst_5 = arith.constant 0.000000e+00 : f32
    %6 = vector.broadcast %cst_5 : f32 to vector<16x256xf32>
    %7 = arith.maximumf %5, %6 : vector<16x256xf32>
    %8 = arith.truncf %7 : vector<16x256xf32> to vector<16x256xbf16>
    %c0_6 = arith.constant 0 : index
    %c0_7 = arith.constant 0 : index
    %9 = vector.load %arg4[%c0_6, %c0_7] : memref<256x512xbf16, #tpu.memory_space<vmem>>, vector<256x512xbf16>
    %cst_8 = arith.constant dense<0.000000e+00> : vector<16x512xf32>
    %10 = tpu.matmul %8, %9, %cst_8 {dimension_numbers = #tpu.dot_dimension_numbers<[1], [0], [0], [1], [0, 0, 1, 1], [], []>} : vector<16x256xbf16>, vector<256x512xbf16>, vector<16x512xf32> -> vector<16x512xf32>
    %c0_9 = arith.constant 0 : index
    %c0_10 = arith.constant 0 : index
    %11 = vector.load %arg5[%c0_9, %c0_10] : memref<1x512xf32, #tpu.memory_space<vmem>>, vector<1x512xf32>
    %12 = vector.broadcast %11 : vector<1x512xf32> to vector<16x512xf32>
    %13 = arith.addf %10, %12 : vector<16x512xf32>
    %cst_11 = arith.constant 0.000000e+00 : f32
    %14 = vector.broadcast %cst_11 : f32 to vector<16x512xf32>
    %15 = arith.maximumf %13, %14 : vector<16x512xf32>
    %16 = arith.truncf %15 : vector<16x512xf32> to vector<16x512xbf16>
    %c0_12 = arith.constant 0 : index
    %c0_13 = arith.constant 0 : index
    %17 = vector.load %arg6[%c0_12, %c0_13] : memref<512x256xbf16, #tpu.memory_space<vmem>>, vector<512x256xbf16>
    %cst_14 = arith.constant dense<0.000000e+00> : vector<16x256xf32>
    %18 = tpu.matmul %16, %17, %cst_14 {dimension_numbers = #tpu.dot_dimension_numbers<[1], [0], [0], [1], [0, 0, 1, 1], [], []>} : vector<16x512xbf16>, vector<512x256xbf16>, vector<16x256xf32> -> vector<16x256xf32>
    %c0_15 = arith.constant 0 : index
    %c0_16 = arith.constant 0 : index
    %19 = vector.load %arg7[%c0_15, %c0_16] : memref<1x256xf32, #tpu.memory_space<vmem>>, vector<1x256xf32>
    %20 = vector.broadcast %19 : vector<1x256xf32> to vector<16x256xf32>
    %21 = arith.addf %18, %20 : vector<16x256xf32>
    %cst_17 = arith.constant 0.000000e+00 : f32
    %22 = vector.broadcast %cst_17 : f32 to vector<16x256xf32>
    %23 = arith.maximumf %21, %22 : vector<16x256xf32>
    %24 = arith.truncf %23 : vector<16x256xf32> to vector<16x256xbf16>
    %c0_18 = arith.constant 0 : index
    %c0_19 = arith.constant 0 : index
    %25 = vector.load %arg8[%c0_18, %c0_19] : memref<256x128xbf16, #tpu.memory_space<vmem>>, vector<256x128xbf16>
    %cst_20 = arith.constant dense<0.000000e+00> : vector<16x128xf32>
    %26 = tpu.matmul %24, %25, %cst_20 {dimension_numbers = #tpu.dot_dimension_numbers<[1], [0], [0], [1], [0, 0, 1, 1], [], []>} : vector<16x256xbf16>, vector<256x128xbf16>, vector<16x128xf32> -> vector<16x128xf32>
    %c0_21 = arith.constant 0 : index
    %c0_22 = arith.constant 0 : index
    %27 = vector.load %arg9[%c0_21, %c0_22] : memref<1x128xf32, #tpu.memory_space<vmem>>, vector<1x128xf32>
    %28 = vector.broadcast %27 : vector<1x128xf32> to vector<16x128xf32>
    %29 = arith.addf %26, %28 : vector<16x128xf32>
    %30 = arith.negf %29 : vector<16x128xf32>
    %31 = math.exp %30 : vector<16x128xf32>
    %cst_23 = arith.constant 1.000000e+00 : f32
    %32 = vector.broadcast %cst_23 : f32 to vector<16x128xf32>
    %33 = arith.addf %32, %31 : vector<16x128xf32>
    %34 = arith.divf %32, %33 : vector<16x128xf32>
    %c0_24 = arith.constant 0 : index
    %c0_25 = arith.constant 0 : index
    %35 = vector.load %arg10[%c0_24, %c0_25] : memref<16x128xf32, #tpu.memory_space<vmem>>, vector<16x128xf32>
    tpu.vector_store %arg10[%c0_24, %c0_25], %34 {strides = array<i32>} : memref<16x128xf32, #tpu.memory_space<vmem>>, vector<16x128xf32>,
    return
  }
  func.func @transform_0(%arg0: i32) -> (i32, i32) {
    %c0_i32 = arith.constant 0 : i32
    %c0_i32_0 = arith.constant 0 : i32
    return %arg0, %c0_i32 : i32, i32
  }
  func.func @transform_1(%arg0: i32) -> (i32, i32) {
    %c0_i32 = arith.constant 0 : i32
    %c0_i32_0 = arith.constant 0 : i32
    %c0_i32_1 = arith.constant 0 : i32
    return %c0_i32, %c0_i32_0 : i32, i32
  }
  func.func @transform_2(%arg0: i32) -> (i32, i32) {
    %c0_i32 = arith.constant 0 : i32
    %c0_i32_0 = arith.constant 0 : i32
    %c0_i32_1 = arith.constant 0 : i32
    return %c0_i32, %c0_i32_0 : i32, i32
  }
  func.func @transform_3(%arg0: i32) -> (i32, i32) {
    %c0_i32 = arith.constant 0 : i32
    %c0_i32_0 = arith.constant 0 : i32
    %c0_i32_1 = arith.constant 0 : i32
    return %c0_i32, %c0_i32_0 : i32, i32
  }
  func.func @transform_4(%arg0: i32) -> (i32, i32) {
    %c0_i32 = arith.constant 0 : i32
    %c0_i32_0 = arith.constant 0 : i32
    %c0_i32_1 = arith.constant 0 : i32
    return %c0_i32, %c0_i32_0 : i32, i32
  }
  func.func @transform_5(%arg0: i32) -> (i32, i32) {
    %c0_i32 = arith.constant 0 : i32
    %c0_i32_0 = arith.constant 0 : i32
    %c0_i32_1 = arith.constant 0 : i32
    return %c0_i32, %c0_i32_0 : i32, i32
  }
  func.func @transform_6(%arg0: i32) -> (i32, i32) {
    %c0_i32 = arith.constant 0 : i32
    %c0_i32_0 = arith.constant 0 : i32
    %c0_i32_1 = arith.constant 0 : i32
    return %c0_i32, %c0_i32_0 : i32, i32
  }
  func.func @transform_7(%arg0: i32) -> (i32, i32) {
    %c0_i32 = arith.constant 0 : i32
    %c0_i32_0 = arith.constant 0 : i32
    %c0_i32_1 = arith.constant 0 : i32
    return %c0_i32, %c0_i32_0 : i32, i32
  }
  func.func @transform_8(%arg0: i32) -> (i32, i32) {
    %c0_i32 = arith.constant 0 : i32
    %c0_i32_0 = arith.constant 0 : i32
    %c0_i32_1 = arith.constant 0 : i32
    return %c0_i32, %c0_i32_0 : i32, i32
  }
  func.func @transform_9(%arg0: i32) -> (i32, i32) {
    %c0_i32 = arith.constant 0 : i32
    %c0_i32_0 = arith.constant 0 : i32
    return %arg0, %c0_i32 : i32, i32
  }
}

</mosaic_0001>

<llo_original>
// kernel: _net_forward_impl.1
$region0: #{_net_forward_impl.1}
  #allocation0 [shape = 'u32[]', space=smem, size = 0x4, offset = 0x4, fixed_abs, tag = 'smem constant byte address 0x4 - core index']
  #allocation1 [shape = 'u32[144,128]{1,0:T(1,128)}', space=vmem, size = 0x12000, scoped, tag = 'internal scratch']
  %s0 = inlined_call_operand.vmem [shape: bf16[16,128], index: 0, kind: input, shape index: {}]
  %s1 = inlined_call_operand.hbm [shape: bf16[128,256], index: 1, kind: input, shape index: {}]
  %s2 = inlined_call_operand.vmem [shape: f32[1,256], index: 2, kind: input, shape index: {}]
  %s3 = inlined_call_operand.hbm [shape: bf16[256,512], index: 3, kind: input, shape index: {}]
  %s4 = inlined_call_operand.vmem [shape: f32[1,512], index: 4, kind: input, shape index: {}]
  %s5 = inlined_call_operand.hbm [shape: bf16[512,256], index: 5, kind: input, shape index: {}]
  %s6 = inlined_call_operand.vmem [shape: f32[1,256], index: 6, kind: input, shape index: {}]
  %s7 = inlined_call_operand.hbm [shape: bf16[256,128], index: 7, kind: input, shape index: {}]
  %s8 = inlined_call_operand.vmem [shape: f32[1,128], index: 8, kind: input, shape index: {}]
  %s9 = inlined_call_operand.vmem [shape: f32[16,128], index: 9, kind: output, shape index: {}]
  %s10 = sld [smem:[#allocation0]]
  $region62: #{_net_forward_impl.1} parent=0
    _
  %s12 = ssub.s32 1, %s10
  %s13 = scalar_select 0, %s12, %s10
  $region1: #{_net_forward_impl.1} parent=0
    #allocation2 [shape = 'u8[65536]{0}', space=vmem, size = 0x10000, scoped, tag = 'input window, operand 1, single buffered']
    #allocation3 [shape = 's32[1]{0}', space=sflag, size = 0x4, scoped, tag = 'scoped memory for _net_forward_impl.1']
    #allocation4 [shape = 'u8[262144]{0}', space=vmem, size = 0x40000, scoped, tag = 'input window, operand 3, single buffered']
    #allocation5 [shape = 's32[1]{0}', space=sflag, size = 0x4, scoped, tag = 'scoped memory for _net_forward_impl.1']
    #allocation6 [shape = 'u8[262144]{0}', space=vmem, size = 0x40000, scoped, tag = 'input window, operand 5, single buffered']
    #allocation7 [shape = 'u8[65536]{0}', space=vmem, size = 0x10000, scoped, tag = 'input window, operand 7, single buffered']
    #allocation8 [shape = 's32[1]{0}', space=sflag, size = 0x4, scoped, tag = 'scoped memory for _net_forward_impl.1']
    %14 = vsyncpa [#allocation3], 0
    %15 = vsyncpa [#allocation5], 0
    %16 = vsyncpa [#allocation8], 0
    // Predicated region
    $region2: #{_net_forward_impl.1} parent=1 // pred_check
      _
    $region3: #{_net_forward_impl.1} parent=1 // pred_check_branch
      %18 = sbr.rel (0) target = $region5
    $region4: #{_net_forward_impl.1} parent=1 // pred_region
      _
    $region5: #{_net_forward_impl.1} parent=1 // pred_fallthru
      _
    // Predicated region
    $region6: #{_net_forward_impl.1} parent=1 // pred_check
      _
    $region7: #{_net_forward_impl.1} parent=1 // pred_check_branch
      %20 = sbr.rel (0) target = $region9
    $region8: #{_net_forward_impl.1} parent=1 // pred_region
      %s22 = ssub.s32 2048, 2048
      %23 = vsyncadd [#allocation3], %s22
      %s24 = sshll.u32 [#allocation2], 4
      %s25 = int_to_ptr.vmem [resolvable:$true] %s24
      %30 = dma.hbm_to_vmem [thread:$0]  %s1, 2048, %s25, [#allocation3], 128, 128, 8
    $region9: #{_net_forward_impl.1} parent=1 // pred_fallthru
      _
    // Predicated region
    $region10: #{_net_forward_impl.1} parent=1 // pred_check
      _
    $region11: #{_net_forward_impl.1} parent=1 // pred_check_branch
      %32 = sbr.rel (0) target = $region13
    $region12: #{_net_forward_impl.1} parent=1 // pred_region
      _
    $region13: #{_net_forward_impl.1} parent=1 // pred_fallthru
      _
    // Predicated region
    $region14: #{_net_forward_impl.1} parent=1 // pred_check
      _
    $region15: #{_net_forward_impl.1} parent=1 // pred_check_branch
      %34 = sbr.rel (0) target = $region17
    $region16: #{_net_forward_impl.1} parent=1 // pred_region
      %s36 = ssub.s32 8192, 8192
      %37 = vsyncadd [#allocation5], %s36
      %s38 = sshll.u32 [#allocation4], 4
      %s39 = int_to_ptr.vmem [resolvable:$true] %s38
      %44 = dma.hbm_to_vmem [thread:$0]  %s3, 8192, %s39, [#allocation5], 256, 256, 16
    $region17: #{_net_forward_impl.1} parent=1 // pred_fallthru
      _
    // Predicated region
    $region18: #{_net_forward_impl.1} parent=1 // pred_check
      _
    $region19: #{_net_forward_impl.1} parent=1 // pred_check_branch
      %46 = sbr.rel (0) target = $region21
    $region20: #{_net_forward_impl.1} parent=1 // pred_region
      _
    $region21: #{_net_forward_impl.1} parent=1 // pred_fallthru
      _
    // Predicated region
    $region22: #{_net_forward_impl.1} parent=1 // pred_check
      _
    $region23: #{_net_forward_impl.1} parent=1 // pred_check_branch
      %48 = sbr.rel (0) target = $region25
    $region24: #{_net_forward_impl.1} parent=1 // pred_region
      %s50 = ssub.s32 8192, 8192
      %51 = vsyncadd [#allocation5], %s50
      %s52 = sshll.u32 [#allocation6], 4
      %s53 = int_to_ptr.vmem [resolvable:$true] %s52
      %58 = dma.hbm_to_vmem [thread:$0]  %s5, 8192, %s53, [#allocation5], 128, 128, 8
    $region25: #{_net_forward_impl.1} parent=1 // pred_fallthru
      _
    // Predicated region
    $region26: #{_net_forward_impl.1} parent=1 // pred_check
      _
    $region27: #{_net_forward_impl.1} parent=1 // pred_check_branch
      %60 = sbr.rel (0) target = $region29
    $region28: #{_net_forward_impl.1} parent=1 // pred_region
      _
    $region29: #{_net_forward_impl.1} parent=1 // pred_fallthru
      _
    // Predicated region
    $region30: #{_net_forward_impl.1} parent=1 // pred_check
      _
    $region31: #{_net_forward_impl.1} parent=1 // pred_check_branch
      %62 = sbr.rel (0) target = $region33
    $region32: #{_net_forward_impl.1} parent=1 // pred_region
      %s64 = ssub.s32 2048, 2048
      %65 = vsyncadd [#allocation8], %s64
      %s66 = sshll.u32 [#allocation7], 4
      %s67 = int_to_ptr.vmem [resolvable:$true] %s66
      %72 = dma.hbm_to_vmem [thread:$0]  %s7, 2048, %s67, [#allocation8], 64, 64, 4
    $region33: #{_net_forward_impl.1} parent=1 // pred_fallthru
      _
    // Predicated region
    $region34: #{_net_forward_impl.1} parent=1 // pred_check
      _
    $region35: #{_net_forward_impl.1} parent=1 // pred_check_branch
      %74 = sbr.rel (0) target = $region37
    $region36: #{_net_forward_impl.1} parent=1 // pred_region
      _
    $region37: #{_net_forward_impl.1} parent=1 // pred_fallthru
      _
    // Predicated region
    $region38: #{_net_forward_impl.1} parent=1 // pred_check
      _
    $region39: #{_net_forward_impl.1} parent=1 // pred_check_branch
      %76 = sbr.rel (0) target = $region41
    $region40: #{_net_forward_impl.1} parent=1 // pred_region
      %77 = dma.done [#allocation3], 2048
    $region41: #{_net_forward_impl.1} parent=1 // pred_fallthru
      _
    // Predicated region
    $region42: #{_net_forward_impl.1} parent=1 // pred_check
      _
    $region43: #{_net_forward_impl.1} parent=1 // pred_check_branch
      %79 = sbr.rel (0) target = $region45
    $region44: #{_net_forward_impl.1} parent=1 // pred_region
      %80 = dma.done [#allocation5], 8192
    $region45: #{_net_forward_impl.1} parent=1 // pred_fallthru
      _
    // Predicated region
    $region46: #{_net_forward_impl.1} parent=1 // pred_check
      _
    $region47: #{_net_forward_impl.1} parent=1 // pred_check_branch
      %82 = sbr.rel (0) target = $region49
    $region48: #{_net_forward_impl.1} parent=1 // pred_region
      %83 = dma.done [#allocation5], 8192
    $region49: #{_net_forward_impl.1} parent=1 // pred_fallthru
      _
    // Predicated region
    $region50: #{_net_forward_impl.1} parent=1 // pred_check
      _
    $region51: #{_net_forward_impl.1} parent=1 // pred_check_branch
      %85 = sbr.rel (0) target = $region53
    $region52: #{_net_forward_impl.1} parent=1 // pred_region
      %86 = dma.done [#allocation8], 2048
    $region53: #{_net_forward_impl.1} parent=1 // pred_fallthru
      _
    %v88 = vld [vmem:[%s0] sm:$0xf]
    %v89 = vld [vmem:[%s0 + $0x4] sm:$0xf]
    %v90 = vld [vmem:[#allocation2] sm:$0xff]
    %v91 = vld [vmem:[#allocation2 + $0x8] sm:$0xff]
    %v92 = vld [vmem:[#allocation2 + $0x10] sm:$0xff]
    %v93 = vld [vmem:[#allocation2 + $0x18] sm:$0xff]
    %v94 = vld [vmem:[#allocation2 + $0x20] sm:$0xff]
    %v95 = vld [vmem:[#allocation2 + $0x28] sm:$0xff]
    %v96 = vld [vmem:[#allocation2 + $0x30] sm:$0xff]
    %v97 = vld [vmem:[#allocation2 + $0x38] sm:$0xff]
    %v98 = vld [vmem:[#allocation2 + $0x40] sm:$0xff]
    %v99 = vld [vmem:[#allocation2 + $0x48] sm:$0xff]
    %v100 = vld [vmem:[#allocation2 + $0x50] sm:$0xff]
    %v101 = vld [vmem:[#allocation2 + $0x58] sm:$0xff]
    %v102 = vld [vmem:[#allocation2 + $0x60] sm:$0xff]
    %v103 = vld [vmem:[#allocation2 + $0x68] sm:$0xff]
    %v104 = vld [vmem:[#allocation2 + $0x70] sm:$0xff]
    %v105 = vld [vmem:[#allocation2 + $0x78] sm:$0xff]
    %v106 = vld [vmem:[%s2] sm:$0x3]
    %v108 = vlaneseq
    %v109 = vshrl.u32 %v108, 7
    %v110 = vsub.s32 0, %v109
    %v111 = vrot.slane %v106, %v110
    %v112 = vlaneseq
    %v113 = vshrl.u32 %v112, 7
    %v114 = vsub.s32 1, %v113
    %v115 = vrot.slane %v106, %v114
    %v120 = vunpack.c.l.b16 %v88
    %v121 = vunpack.c.l.b16 %v89
    %v122 = vpack.c.b16 %v121, %v120
    %v140 = vunpack.c.l.b16 %v90
    %v141 = vunpack.c.h.b16 %v90
    %v142 = vunpack.c.l.b16 %v91
    %v143 = vunpack.c.h.b16 %v91
    %v144 = vunpack.c.l.b16 %v92
    %v145 = vunpack.c.h.b16 %v92
    %v146 = vunpack.c.l.b16 %v93
    %v147 = vunpack.c.h.b16 %v93
    %v148 = vunpack.c.l.b16 %v94
    %v149 = vunpack.c.h.b16 %v94
    %v150 = vunpack.c.l.b16 %v95
    %v151 = vunpack.c.h.b16 %v95
    %v152 = vunpack.c.l.b16 %v96
    %v153 = vunpack.c.h.b16 %v96
    %v154 = vunpack.c.l.b16 %v97
    %v155 = vunpack.c.h.b16 %v97
    %v156 = vunpack.c.l.b16 %v98
    %v157 = vunpack.c.h.b16 %v98
    %v158 = vunpack.c.l.b16 %v99
    %v159 = vunpack.c.h.b16 %v99
    %v160 = vunpack.c.l.b16 %v100
    %v161 = vunpack.c.h.b16 %v100
    %v162 = vunpack.c.l.b16 %v101
    %v163 = vunpack.c.h.b16 %v101
    %v164 = vunpack.c.l.b16 %v102
    %v165 = vunpack.c.h.b16 %v102
    %v166 = vunpack.c.l.b16 %v103
    %v167 = vunpack.c.h.b16 %v103
    %v168 = vunpack.c.l.b16 %v104
    %v169 = vunpack.c.h.b16 %v104
    %v170 = vunpack.c.l.b16 %v105
    %v171 = vunpack.c.h.b16 %v105
    %v172 = vpack.c.b16 %v142, %v140
    %v173 = vpack.c.b16 %v143, %v141
    %v174 = vpack.c.b16 %v146, %v144
    %v175 = vpack.c.b16 %v147, %v145
    %v176 = vpack.c.b16 %v150, %v148
    %v177 = vpack.c.b16 %v151, %v149
    %v178 = vpack.c.b16 %v154, %v152
    %v179 = vpack.c.b16 %v155, %v153
    %v180 = vpack.c.b16 %v158, %v156
    %v181 = vpack.c.b16 %v159, %v157
    %v182 = vpack.c.b16 %v162, %v160
    %v183 = vpack.c.b16 %v163, %v161
    %v184 = vpack.c.b16 %v166, %v164
    %v185 = vpack.c.b16 %v167, %v165
    %v186 = vpack.c.b16 %v170, %v168
    %v187 = vpack.c.b16 %v171, %v169
    %204 = vmatprep.subr.bf16.mxu0 %v187
    %205 = vmatpush1.bf16.msra.mxu0 %v186
    %206 = vmatprep.subr.bf16.mxu0 %v185
    %207 = vmatpush1.bf16.msra.mxu0 %v184
    %208 = vmatprep.subr.bf16.mxu0 %v183
    %209 = vmatpush1.bf16.msra.mxu0 %v182
    %210 = vmatprep.subr.bf16.mxu0 %v181
    %211 = vmatpush1.bf16.msra.mxu0 %v180
    %212 = vmatprep.subr.bf16.mxu0 %v179
    %213 = vmatpush1.bf16.msra.mxu0 %v178
    %214 = vmatprep.subr.bf16.mxu0 %v177
    %215 = vmatpush1.bf16.msra.mxu0 %v176
    %216 = vmatprep.subr.bf16.mxu0 %v175
    %217 = vmatpush1.bf16.msra.mxu0 %v174
    %218 = vmatprep.subr.bf16.mxu0 %v173
    %219 = vmatpush1.bf16.msra.mxu0 %v172
    %220 = vmatprep.subr.bf16.mxu0 0
    %221 = vmatpush2.bf16.msra.mxu0 0
    %222 = vmatprep.subr.bf16.mxu0 0
    %223 = vmatpush2.bf16.msra.mxu0 0
    %224 = vmatprep.subr.bf16.mxu0 0
    %225 = vmatpush2.bf16.msra.mxu0 0
    %226 = vmatprep.subr.bf16.mxu0 0
    %227 = vmatpush2.bf16.msra.mxu0 0
    %228 = vmatprep.subr.bf16.mxu0 0
    %229 = vmatpush2.bf16.msra.mxu0 0
    %230 = vmatprep.subr.bf16.mxu0 0
    %231 = vmatpush2.bf16.msra.mxu0 0
    %232 = vmatprep.subr.bf16.mxu0 0
    %233 = vmatpush2.bf16.msra.mxu0 0
    %234 = vmatprep.subr.bf16.mxu0 0
    %235 = vmatpush2.bf16.msra.mxu0 0
    %236 = vmatprep.mubr.bf16.mxu0 0
    %237 = vmatmul.mubr.bf16.gmra.mxu0 %v122
    %v238 = vpop.f32.mrf.mxu0
    %v239 = vadd.f32 %v111, %v238
    %v240 = vpop.f32.mrf.mxu0
    %v241 = vadd.f32 %v115, %v240
    %v242 = vpop.f32.mrf.mxu0
    %v243 = vadd.f32 %v111, %v242
    %v244 = vpop.f32.mrf.mxu0
    %v245 = vadd.f32 %v115, %v244
    %246 = vdwg.mxu0
    %v247 = vmax.f32 %v239, 0.0
    %v248 = vmax.f32 %v241, 0.0
    %v249 = vmax.f32 %v243, 0.0
    %v250 = vmax.f32 %v245, 0.0
    %v251 = vpack.c.bf16 %v249, %v247
    %v252 = vpack.c.bf16 %v250, %v248
    %v253 = vld [vmem:[#allocation4] sm:$0xff]
    %v254 = vld [vmem:[#allocation4 + $0x8] sm:$0xff]
    %v255 = vld [vmem:[#allocation4 + $0x10] sm:$0xff]
    %v256 = vld [vmem:[#allocation4 + $0x18] sm:$0xff]
    %v257 = vld [vmem:[#allocation4 + $0x20] sm:$0xff]
    %v258 = vld [vmem:[#allocation4 + $0x28] sm:$0xff]
    %v259 = vld [vmem:[#allocation4 + $0x30] sm:$0xff]
    %v260 = vld [vmem:[#allocation4 + $0x38] sm:$0xff]
    %v261 = vld [vmem:[#allocation4 + $0x40] sm:$0xff]
    %v262 = vld [vmem:[#allocation4 + $0x48] sm:$0xff]
    %v263 = vld [vmem:[#allocation4 + $0x50] sm:$0xff]
    %v264 = vld [vmem:[#allocation4 + $0x58] sm:$0xff]
    %v265 = vld [vmem:[#allocation4 + $0x60] sm:$0xff]
    %v266 = vld [vmem:[#allocation4 + $0x68] sm:$0xff]
    %v267 = vld [vmem:[#allocation4 + $0x70] sm:$0xff]
    %v268 = vld [vmem:[#allocation4 + $0x78] sm:$0xff]
    %v269 = vld [vmem:[#allocation4 + $0x80] sm:$0xff]
    %v270 = vld [vmem:[#allocation4 + $0x88] sm:$0xff]
    %v271 = vld [vmem:[#allocation4 + $0x90] sm:$0xff]
    %v272 = vld [vmem:[#allocation4 + $0x98] sm:$0xff]
    %v273 = vld [vmem:[#allocation4 + $0xa0] sm:$0xff]
    %v274 = vld [vmem:[#allocation4 + $0xa8] sm:$0xff]
    %v275 = vld [vmem:[#allocation4 + $0xb0] sm:$0xff]
    %v276 = vld [vmem:[#allocation4 + $0xb8] sm:$0xff]
    %v277 = vld [vmem:[#allocation4 + $0xc0] sm:$0xff]
    %v278 = vld [vmem:[#allocation4 + $0xc8] sm:$0xff]
    %v279 = vld [vmem:[#allocation4 + $0xd0] sm:$0xff]
    %v280 = vld [vmem:[#allocation4 + $0xd8] sm:$0xff]
    %v281 = vld [vmem:[#allocation4 + $0xe0] sm:$0xff]
    %v282 = vld [vmem:[#allocation4 + $0xe8] sm:$0xff]
    %v283 = vld [vmem:[#allocation4 + $0xf0] sm:$0xff]
    %v284 = vld [vmem:[#allocation4 + $0xf8] sm:$0xff]
    %v285 = vld [vmem:[#allocation4 + $0x100] sm:$0xff]
    %v286 = vld [vmem:[#allocation4 + $0x108] sm:$0xff]
    %v287 = vld [vmem:[#allocation4 + $0x110] sm:$0xff]
    %v288 = vld [vmem:[#allocation4 + $0x118] sm:$0xff]
    %v289 = vld [vmem:[#allocation4 + $0x120] sm:$0xff]
    %v290 = vld [vmem:[#allocation4 + $0x128] sm:$0xff]
    %v291 = vld [vmem:[#allocation4 + $0x130] sm:$0xff]
    %v292 = vld [vmem:[#allocation4 + $0x138] sm:$0xff]
    %v293 = vld [vmem:[#allocation4 + $0x140] sm:$0xff]
    %v294 = vld [vmem:[#allocation4 + $0x148] sm:$0xff]
    %v295 = vld [vmem:[#allocation4 + $0x150] sm:$0xff]
    %v296 = vld [vmem:[#allocation4 + $0x158] sm:$0xff]
    %v297 = vld [vmem:[#allocation4 + $0x160] sm:$0xff]
    %v298 = vld [vmem:[#allocation4 + $0x168] sm:$0xff]
    %v299 = vld [vmem:[#allocation4 + $0x170] sm:$0xff]
    %v300 = vld [vmem:[#allocation4 + $0x178] sm:$0xff]
    %v301 = vld [vmem:[#allocation4 + $0x180] sm:$0xff]
    %v302 = vld [vmem:[#allocation4 + $0x188] sm:$0xff]
    %v303 = vld [vmem:[#allocation4 + $0x190] sm:$0xff]
    %v304 = vld [vmem:[#allocation4 + $0x198] sm:$0xff]
    %v305 = vld [vmem:[#allocation4 + $0x1a0] sm:$0xff]
    %v306 = vld [vmem:[#allocation4 + $0x1a8] sm:$0xff]
    %v307 = vld [vmem:[#allocation4 + $0x1b0] sm:$0xff]
    %v308 = vld [vmem:[#allocation4 + $0x1b8] sm:$0xff]
    %v309 = vld [vmem:[#allocation4 + $0x1c0] sm:$0xff]
    %v310 = vld [vmem:[#allocation4 + $0x1c8] sm:$0xff]
    %v311 = vld [vmem:[#allocation4 + $0x1d0] sm:$0xff]
    %v312 = vld [vmem:[#allocation4 + $0x1d8] sm:$0xff]
    %v313 = vld [vmem:[#allocation4 + $0x1e0] sm:$0xff]
    %v314 = vld [vmem:[#allocation4 + $0x1e8] sm:$0xff]
    %v315 = vld [vmem:[#allocation4 + $0x1f0] sm:$0xff]
    %v316 = vld [vmem:[#allocation4 + $0x1f8] sm:$0xff]
    %v317 = vld [vmem:[%s4] sm:$0xf]
    %v319 = vlaneseq
    %v320 = vshrl.u32 %v319, 7
    %v321 = vsub.s32 0, %v320
    %v322 = vrot.slane %v317, %v321
    %v323 = vlaneseq
    %v324 = vshrl.u32 %v323, 7
    %v325 = vsub.s32 1, %v324
    %v326 = vrot.slane %v317, %v325
    %v327 = vlaneseq
    %v328 = vshrl.u32 %v327, 7
    %v329 = vsub.s32 2, %v328
    %v330 = vrot.slane %v317, %v329
    %v331 = vlaneseq
    %v332 = vshrl.u32 %v331, 7
    %v333 = vsub.s32 3, %v332
    %v334 = vrot.slane %v317, %v333
    %v403 = vunpack.c.l.b16 %v253
    %v404 = vunpack.c.h.b16 %v253
    %v405 = vunpack.c.l.b16 %v254
    %v406 = vunpack.c.h.b16 %v254
    %v407 = vunpack.c.l.b16 %v255
    %v408 = vunpack.c.h.b16 %v255
    %v409 = vunpack.c.l.b16 %v256
    %v410 = vunpack.c.h.b16 %v256
    %v411 = vunpack.c.l.b16 %v257
    %v412 = vunpack.c.h.b16 %v257
    %v413 = vunpack.c.l.b16 %v258
    %v414 = vunpack.c.h.b16 %v258
    %v415 = vunpack.c.l.b16 %v259
    %v416 = vunpack.c.h.b16 %v259
    %v417 = vunpack.c.l.b16 %v260
    %v418 = vunpack.c.h.b16 %v260
    %v419 = vunpack.c.l.b16 %v261
    %v420 = vunpack.c.h.b16 %v261
    %v421 = vunpack.c.l.b16 %v262
    %v422 = vunpack.c.h.b16 %v262
    %v423 = vunpack.c.l.b16 %v263
    %v424 = vunpack.c.h.b16 %v263
    %v425 = vunpack.c.l.b16 %v264
    %v426 = vunpack.c.h.b16 %v264
    %v427 = vunpack.c.l.b16 %v265
    %v428 = vunpack.c.h.b16 %v265
    %v429 = vunpack.c.l.b16 %v266
    %v430 = vunpack.c.h.b16 %v266
    %v431 = vunpack.c.l.b16 %v267
    %v432 = vunpack.c.h.b16 %v267
    %v433 = vunpack.c.l.b16 %v268
    %v434 = vunpack.c.h.b16 %v268
    %v435 = vunpack.c.l.b16 %v269
    %v436 = vunpack.c.h.b16 %v269
    %v437 = vunpack.c.l.b16 %v270
    %v438 = vunpack.c.h.b16 %v270
    %v439 = vunpack.c.l.b16 %v271
    %v440 = vunpack.c.h.b16 %v271
    %v441 = vunpack.c.l.b16 %v272
    %v442 = vunpack.c.h.b16 %v272
    %v443 = vunpack.c.l.b16 %v273
    %v444 = vunpack.c.h.b16 %v273
    %v445 = vunpack.c.l.b16 %v274
    %v446 = vunpack.c.h.b16 %v274
    %v447 = vunpack.c.l.b16 %v275
    %v448 = vunpack.c.h.b16 %v275
    %v449 = vunpack.c.l.b16 %v276
    %v450 = vunpack.c.h.b16 %v276
    %v451 = vunpack.c.l.b16 %v277
    %v452 = vunpack.c.h.b16 %v277
    %v453 = vunpack.c.l.b16 %v278
    %v454 = vunpack.c.h.b16 %v278
    %v455 = vunpack.c.l.b16 %v279
    %v456 = vunpack.c.h.b16 %v279
    %v457 = vunpack.c.l.b16 %v280
    %v458 = vunpack.c.h.b16 %v280
    %v459 = vunpack.c.l.b16 %v281
    %v460 = vunpack.c.h.b16 %v281
    %v461 = vunpack.c.l.b16 %v282
    %v462 = vunpack.c.h.b16 %v282
    %v463 = vunpack.c.l.b16 %v283
    %v464 = vunpack.c.h.b16 %v283
    %v465 = vunpack.c.l.b16 %v284
    %v466 = vunpack.c.h.b16 %v284
    %v467 = vunpack.c.l.b16 %v285
    %v468 = vunpack.c.h.b16 %v285
    %v469 = vunpack.c.l.b16 %v286
    %v470 = vunpack.c.h.b16 %v286
    %v471 = vunpack.c.l.b16 %v287
    %v472 = vunpack.c.h.b16 %v287
    %v473 = vunpack.c.l.b16 %v288
    %v474 = vunpack.c.h.b16 %v288
    %v475 = vunpack.c.l.b16 %v289
    %v476 = vunpack.c.h.b16 %v289
    %v477 = vunpack.c.l.b16 %v290
    %v478 = vunpack.c.h.b16 %v290
    %v479 = vunpack.c.l.b16 %v291
    %v480 = vunpack.c.h.b16 %v291
    %v481 = vunpack.c.l.b16 %v292
    %v482 = vunpack.c.h.b16 %v292
    %v483 = vunpack.c.l.b16 %v293
    %v484 = vunpack.c.h.b16 %v293
    %v485 = vunpack.c.l.b16 %v294
    %v486 = vunpack.c.h.b16 %v294
    %v487 = vunpack.c.l.b16 %v295
    %v488 = vunpack.c.h.b16 %v295
    %v489 = vunpack.c.l.b16 %v296
    %v490 = vunpack.c.h.b16 %v296
    %v491 = vunpack.c.l.b16 %v297
    %v492 = vunpack.c.h.b16 %v297
    %v493 = vunpack.c.l.b16 %v298
    %v494 = vunpack.c.h.b16 %v298
    %v495 = vunpack.c.l.b16 %v299
    %v496 = vunpack.c.h.b16 %v299
    %v497 = vunpack.c.l.b16 %v300
    %v498 = vunpack.c.h.b16 %v300
    %v499 = vunpack.c.l.b16 %v301
    %v500 = vunpack.c.h.b16 %v301
    %v501 = vunpack.c.l.b16 %v302
    %v502 = vunpack.c.h.b16 %v302
    %v503 = vunpack.c.l.b16 %v303
    %v504 = vunpack.c.h.b16 %v303
    %v505 = vunpack.c.l.b16 %v304
    %v506 = vunpack.c.h.b16 %v304
    %v507 = vunpack.c.l.b16 %v305
    %v508 = vunpack.c.h.b16 %v305
    %v509 = vunpack.c.l.b16 %v306
    %v510 = vunpack.c.h.b16 %v306
    %v511 = vunpack.c.l.b16 %v307
    %v512 = vunpack.c.h.b16 %v307
    %v513 = vunpack.c.l.b16 %v308
    %v514 = vunpack.c.h.b16 %v308
    %v515 = vunpack.c.l.b16 %v309
    %v516 = vunpack.c.h.b16 %v309
    %v517 = vunpack.c.l.b16 %v310
    %v518 = vunpack.c.h.b16 %v310
    %v519 = vunpack.c.l.b16 %v311
    %v520 = vunpack.c.h.b16 %v311
    %v521 = vunpack.c.l.b16 %v312
    %v522 = vunpack.c.h.b16 %v312
    %v523 = vunpack.c.l.b16 %v313
    %v524 = vunpack.c.h.b16 %v313
    %v525 = vunpack.c.l.b16 %v314
    %v526 = vunpack.c.h.b16 %v314
    %v527 = vunpack.c.l.b16 %v315
    %v528 = vunpack.c.h.b16 %v315
    %v529 = vunpack.c.l.b16 %v316
    %v530 = vunpack.c.h.b16 %v316
    %v531 = vpack.c.b16 %v407, %v403
    %v532 = vpack.c.b16 %v408, %v404
    %v533 = vpack.c.b16 %v409, %v405
    %v534 = vpack.c.b16 %v410, %v406
    %v535 = vpack.c.b16 %v415, %v411
    %v536 = vpack.c.b16 %v416, %v412
    %v537 = vpack.c.b16 %v417, %v413
    %v538 = vpack.c.b16 %v418, %v414
    %v539 = vpack.c.b16 %v423, %v419
    %v540 = vpack.c.b16 %v424, %v420
    %v541 = vpack.c.b16 %v425, %v421
    %v542 = vpack.c.b16 %v426, %v422
    %v543 = vpack.c.b16 %v431, %v427
    %v544 = vpack.c.b16 %v432, %v428
    %v545 = vpack.c.b16 %v433, %v429
    %v546 = vpack.c.b16 %v434, %v430
    %v547 = vpack.c.b16 %v439, %v435
    %v548 = vpack.c.b16 %v440, %v436
    %v549 = vpack.c.b16 %v441, %v437
    %v550 = vpack.c.b16 %v442, %v438
    %v551 = vpack.c.b16 %v447, %v443
    %v552 = vpack.c.b16 %v448, %v444
    %v553 = vpack.c.b16 %v449, %v445
    %v554 = vpack.c.b16 %v450, %v446
    %v555 = vpack.c.b16 %v455, %v451
    %v556 = vpack.c.b16 %v456, %v452
    %v557 = vpack.c.b16 %v457, %v453
    %v558 = vpack.c.b16 %v458, %v454
    %v559 = vpack.c.b16 %v463, %v459
    %v560 = vpack.c.b16 %v464, %v460
    %v561 = vpack.c.b16 %v465, %v461
    %v562 = vpack.c.b16 %v466, %v462
    %v563 = vpack.c.b16 %v471, %v467
    %v564 = vpack.c.b16 %v472, %v468
    %v565 = vpack.c.b16 %v473, %v469
    %v566 = vpack.c.b16 %v474, %v470
    %v567 = vpack.c.b16 %v479, %v475
    %v568 = vpack.c.b16 %v480, %v476
    %v569 = vpack.c.b16 %v481, %v477
    %v570 = vpack.c.b16 %v482, %v478
    %v571 = vpack.c.b16 %v487, %v483
    %v572 = vpack.c.b16 %v488, %v484
    %v573 = vpack.c.b16 %v489, %v485
    %v574 = vpack.c.b16 %v490, %v486
    %v575 = vpack.c.b16 %v495, %v491
    %v576 = vpack.c.b16 %v496, %v492
    %v577 = vpack.c.b16 %v497, %v493
    %v578 = vpack.c.b16 %v498, %v494
    %v579 = vpack.c.b16 %v503, %v499
    %v580 = vpack.c.b16 %v504, %v500
    %v581 = vpack.c.b16 %v505, %v501
    %v582 = vpack.c.b16 %v506, %v502
    %v583 = vpack.c.b16 %v511, %v507
    %v584 = vpack.c.b16 %v512, %v508
    %v585 = vpack.c.b16 %v513, %v509
    %v586 = vpack.c.b16 %v514, %v510
    %v587 = vpack.c.b16 %v519, %v515
    %v588 = vpack.c.b16 %v520, %v516
    %v589 = vpack.c.b16 %v521, %v517
    %v590 = vpack.c.b16 %v522, %v518
    %v591 = vpack.c.b16 %v527, %v523
    %v592 = vpack.c.b16 %v528, %v524
    %v593 = vpack.c.b16 %v529, %v525
    %v594 = vpack.c.b16 %v530, %v526
    %659 = vmatprep.subr.bf16.mxu0 %v560
    %660 = vmatpush1.bf16.msra.mxu0 %v559
    %661 = vmatprep.subr.bf16.mxu0 %v556
    %662 = vmatpush1.bf16.msra.mxu0 %v555
    %663 = vmatprep.subr.bf16.mxu0 %v552
    %664 = vmatpush1.bf16.msra.mxu0 %v551
    %665 = vmatprep.subr.bf16.mxu0 %v548
    %666 = vmatpush1.bf16.msra.mxu0 %v547
    %667 = vmatprep.subr.bf16.mxu0 %v544
    %668 = vmatpush1.bf16.msra.mxu0 %v543
    %669 = vmatprep.subr.bf16.mxu0 %v540
    %670 = vmatpush1.bf16.msra.mxu0 %v539
    %671 = vmatprep.subr.bf16.mxu0 %v536
    %672 = vmatpush1.bf16.msra.mxu0 %v535
    %673 = vmatprep.subr.bf16.mxu0 %v532
    %674 = vmatpush1.bf16.msra.mxu0 %v531
    %675 = vmatprep.subr.bf16.mxu0 %v592
    %676 = vmatpush2.bf16.msra.mxu0 %v591
    %677 = vmatprep.subr.bf16.mxu0 %v588
    %678 = vmatpush2.bf16.msra.mxu0 %v587
    %679 = vmatprep.subr.bf16.mxu0 %v584
    %680 = vmatpush2.bf16.msra.mxu0 %v583
    %681 = vmatprep.subr.bf16.mxu0 %v580
    %682 = vmatpush2.bf16.msra.mxu0 %v579
    %683 = vmatprep.subr.bf16.mxu0 %v576
    %684 = vmatpush2.bf16.msra.mxu0 %v575
    %685 = vmatprep.subr.bf16.mxu0 %v572
    %686 = vmatpush2.bf16.msra.mxu0 %v571
    %687 = vmatprep.subr.bf16.mxu0 %v568
    %688 = vmatpush2.bf16.msra.mxu0 %v567
    %689 = vmatprep.subr.bf16.mxu0 %v564
    %690 = vmatpush2.bf16.msra.mxu0 %v563
    %691 = vmatprep.mubr.bf16.mxu0 %v252
    %692 = vmatmul.mubr.bf16.gmra.mxu0 %v251
    %v693 = vpop.f32.mrf.mxu0
    %v694 = vadd.f32 %v322, %v693
    %v695 = vpop.f32.mrf.mxu0
    %v696 = vadd.f32 %v326, %v695
    %v697 = vpop.f32.mrf.mxu0
    %v698 = vadd.f32 %v322, %v697
    %v699 = vpop.f32.mrf.mxu0
    %v700 = vadd.f32 %v326, %v699
    %701 = vdwg.mxu0
    %702 = vmatprep.subr.bf16.mxu0 %v562
    %703 = vmatpush1.bf16.msra.mxu0 %v561
    %704 = vmatprep.subr.bf16.mxu0 %v558
    %705 = vmatpush1.bf16.msra.mxu0 %v557
    %706 = vmatprep.subr.bf16.mxu0 %v554
    %707 = vmatpush1.bf16.msra.mxu0 %v553
    %708 = vmatprep.subr.bf16.mxu0 %v550
    %709 = vmatpush1.bf16.msra.mxu0 %v549
    %710 = vmatprep.subr.bf16.mxu0 %v546
    %711 = vmatpush1.bf16.msra.mxu0 %v545
    %712 = vmatprep.subr.bf16.mxu0 %v542
    %713 = vmatpush1.bf16.msra.mxu0 %v541
    %714 = vmatprep.subr.bf16.mxu0 %v538
    %715 = vmatpush1.bf16.msra.mxu0 %v537
    %716 = vmatprep.subr.bf16.mxu0 %v534
    %717 = vmatpush1.bf16.msra.mxu0 %v533
    %718 = vmatprep.subr.bf16.mxu0 %v594
    %719 = vmatpush2.bf16.msra.mxu0 %v593
    %720 = vmatprep.subr.bf16.mxu0 %v590
    %721 = vmatpush2.bf16.msra.mxu0 %v589
    %722 = vmatprep.subr.bf16.mxu0 %v586
    %723 = vmatpush2.bf16.msra.mxu0 %v585
    %724 = vmatprep.subr.bf16.mxu0 %v582
    %725 = vmatpush2.bf16.msra.mxu0 %v581
    %726 = vmatprep.subr.bf16.mxu0 %v578
    %727 = vmatpush2.bf16.msra.mxu0 %v577
    %728 = vmatprep.subr.bf16.mxu0 %v574
    %729 = vmatpush2.bf16.msra.mxu0 %v573
    %730 = vmatprep.subr.bf16.mxu0 %v570
    %731 = vmatpush2.bf16.msra.mxu0 %v569
    %732 = vmatprep.subr.bf16.mxu0 %v566
    %733 = vmatpush2.bf16.msra.mxu0 %v565
    %734 = vmatprep.mubr.bf16.mxu0 %v252
    %735 = vmatmul.mubr.bf16.gmra.mxu0 %v251
    %v736 = vpop.f32.mrf.mxu0
    %v737 = vadd.f32 %v330, %v736
    %v738 = vpop.f32.mrf.mxu0
    %v739 = vadd.f32 %v334, %v738
    %v740 = vpop.f32.mrf.mxu0
    %v741 = vadd.f32 %v330, %v740
    %v742 = vpop.f32.mrf.mxu0
    %v743 = vadd.f32 %v334, %v742
    %744 = vdwg.mxu0
    %v745 = vmax.f32 %v694, 0.0
    %v746 = vmax.f32 %v696, 0.0
    %v747 = vmax.f32 %v737, 0.0
    %v748 = vmax.f32 %v739, 0.0
    %v749 = vmax.f32 %v698, 0.0
    %v750 = vmax.f32 %v700, 0.0
    %v751 = vmax.f32 %v741, 0.0
    %v752 = vmax.f32 %v743, 0.0
    %v753 = vpack.c.bf16 %v749, %v745
    %v754 = vpack.c.bf16 %v750, %v746
    %v755 = vpack.c.bf16 %v751, %v747
    %v756 = vpack.c.bf16 %v752, %v748
    %v757 = vld [vmem:[#allocation6] sm:$0xff]
    %v758 = vld [vmem:[#allocation6 + $0x8] sm:$0xff]
    %v759 = vld [vmem:[#allocation6 + $0x10] sm:$0xff]
    %v760 = vld [vmem:[#allocation6 + $0x18] sm:$0xff]
    %v761 = vld [vmem:[#allocation6 + $0x20] sm:$0xff]
    %v762 = vld [vmem:[#allocation6 + $0x28] sm:$0xff]
    %v763 = vld [vmem:[#allocation6 + $0x30] sm:$0xff]
    %v764 = vld [vmem:[#allocation6 + $0x38] sm:$0xff]
    %v765 = vld [vmem:[#allocation6 + $0x40] sm:$0xff]
    %v766 = vld [vmem:[#allocation6 + $0x48] sm:$0xff]
    %v767 = vld [vmem:[#allocation6 + $0x50] sm:$0xff]
    %v768 = vld [vmem:[#allocation6 + $0x58] sm:$0xff]
    %v769 = vld [vmem:[#allocation6 + $0x60] sm:$0xff]
    %v770 = vld [vmem:[#allocation6 + $0x68] sm:$0xff]
    %v771 = vld [vmem:[#allocation6 + $0x70] sm:$0xff]
    %v772 = vld [vmem:[#allocation6 + $0x78] sm:$0xff]
    %v773 = vld [vmem:[#allocation6 + $0x80] sm:$0xff]
    %v774 = vld [vmem:[#allocation6 + $0x88] sm:$0xff]
    %v775 = vld [vmem:[#allocation6 + $0x90] sm:$0xff]
    %v776 = vld [vmem:[#allocation6 + $0x98] sm:$0xff]
    %v777 = vld [vmem:[#allocation6 + $0xa0] sm:$0xff]
    %v778 = vld [vmem:[#allocation6 + $0xa8] sm:$0xff]
    %v779 = vld [vmem:[#allocation6 + $0xb0] sm:$0xff]
    %v780 = vld [vmem:[#allocation6 + $0xb8] sm:$0xff]
    %v781 = vld [vmem:[#allocation6 + $0xc0] sm:$0xff]
    %v782 = vld [vmem:[#allocation6 + $0xc8] sm:$0xff]
    %v783 = vld [vmem:[#allocation6 + $0xd0] sm:$0xff]
    %v784 = vld [vmem:[#allocation6 + $0xd8] sm:$0xff]
    %v785 = vld [vmem:[#allocation6 + $0xe0] sm:$0xff]
    %v786 = vld [vmem:[#allocation6 + $0xe8] sm:$0xff]
    %v787 = vld [vmem:[#allocation6 + $0xf0] sm:$0xff]
    %v788 = vld [vmem:[#allocation6 + $0xf8] sm:$0xff]
    %v789 = vld [vmem:[#allocation6 + $0x100] sm:$0xff]
    %v790 = vld [vmem:[#allocation6 + $0x108] sm:$0xff]
    %v791 = vld [vmem:[#allocation6 + $0x110] sm:$0xff]
    %v792 = vld [vmem:[#allocation6 + $0x118] sm:$0xff]
    %v793 = vld [vmem:[#allocation6 + $0x120] sm:$0xff]
    %v794 = vld [vmem:[#allocation6 + $0x128] sm:$0xff]
    %v795 = vld [vmem:[#allocation6 + $0x130] sm:$0xff]
    %v796 = vld [vmem:[#allocation6 + $0x138] sm:$0xff]
    %v797 = vld [vmem:[#allocation6 + $0x140] sm:$0xff]
    %v798 = vld [vmem:[#allocation6 + $0x148] sm:$0xff]
    %v799 = vld [vmem:[#allocation6 + $0x150] sm:$0xff]
    %v800 = vld [vmem:[#allocation6 + $0x158] sm:$0xff]
    %v801 = vld [vmem:[#allocation6 + $0x160] sm:$0xff]
    %v802 = vld [vmem:[#allocation6 + $0x168] sm:$0xff]
    %v803 = vld [vmem:[#allocation6 + $0x170] sm:$0xff]
    %v804 = vld [vmem:[#allocation6 + $0x178] sm:$0xff]
    %v805 = vld [vmem:[#allocation6 + $0x180] sm:$0xff]
    %v806 = vld [vmem:[#allocation6 + $0x188] sm:$0xff]
    %v807 = vld [vmem:[#allocation6 + $0x190] sm:$0xff]
    %v808 = vld [vmem:[#allocation6 + $0x198] sm:$0xff]
    %v809 = vld [vmem:[#allocation6 + $0x1a0] sm:$0xff]
    %v810 = vld [vmem:[#allocation6 + $0x1a8] sm:$0xff]
    %v811 = vld [vmem:[#allocation6 + $0x1b0] sm:$0xff]
    %v812 = vld [vmem:[#allocation6 + $0x1b8] sm:$0xff]
    %v813 = vld [vmem:[#allocation6 + $0x1c0] sm:$0xff]
    %v814 = vld [vmem:[#allocation6 + $0x1c8] sm:$0xff]
    %v815 = vld [vmem:[#allocation6 + $0x1d0] sm:$0xff]
    %v816 = vld [vmem:[#allocation6 + $0x1d8] sm:$0xff]
    %v817 = vld [vmem:[#allocation6 + $0x1e0] sm:$0xff]
    %v818 = vld [vmem:[#allocation6 + $0x1e8] sm:$0xff]
    %v819 = vld [vmem:[#allocation6 + $0x1f0] sm:$0xff]
    %v820 = vld [vmem:[#allocation6 + $0x1f8] sm:$0xff]
    %v821 = vld [vmem:[%s6] sm:$0x3]
    %v823 = vlaneseq
    %v824 = vshrl.u32 %v823, 7
    %v825 = vsub.s32 0, %v824
    %v826 = vrot.slane %v821, %v825
    %v827 = vlaneseq
    %v828 = vshrl.u32 %v827, 7
    %v829 = vsub.s32 1, %v828
    %v830 = vrot.slane %v821, %v829
    %v897 = vunpack.c.l.b16 %v757
    %v898 = vunpack.c.h.b16 %v757
    %v899 = vunpack.c.l.b16 %v758
    %v900 = vunpack.c.h.b16 %v758
    %v901 = vunpack.c.l.b16 %v759
    %v902 = vunpack.c.h.b16 %v759
    %v903 = vunpack.c.l.b16 %v760
    %v904 = vunpack.c.h.b16 %v760
    %v905 = vunpack.c.l.b16 %v761
    %v906 = vunpack.c.h.b16 %v761
    %v907 = vunpack.c.l.b16 %v762
    %v908 = vunpack.c.h.b16 %v762
    %v909 = vunpack.c.l.b16 %v763
    %v910 = vunpack.c.h.b16 %v763
    %v911 = vunpack.c.l.b16 %v764
    %v912 = vunpack.c.h.b16 %v764
    %v913 = vunpack.c.l.b16 %v765
    %v914 = vunpack.c.h.b16 %v765
    %v915 = vunpack.c.l.b16 %v766
    %v916 = vunpack.c.h.b16 %v766
    %v917 = vunpack.c.l.b16 %v767
    %v918 = vunpack.c.h.b16 %v767
    %v919 = vunpack.c.l.b16 %v768
    %v920 = vunpack.c.h.b16 %v768
    %v921 = vunpack.c.l.b16 %v769
    %v922 = vunpack.c.h.b16 %v769
    %v923 = vunpack.c.l.b16 %v770
    %v924 = vunpack.c.h.b16 %v770
    %v925 = vunpack.c.l.b16 %v771
    %v926 = vunpack.c.h.b16 %v771
    %v927 = vunpack.c.l.b16 %v772
    %v928 = vunpack.c.h.b16 %v772
    %v929 = vunpack.c.l.b16 %v773
    %v930 = vunpack.c.h.b16 %v773
    %v931 = vunpack.c.l.b16 %v774
    %v932 = vunpack.c.h.b16 %v774
    %v933 = vunpack.c.l.b16 %v775
    %v934 = vunpack.c.h.b16 %v775
    %v935 = vunpack.c.l.b16 %v776
    %v936 = vunpack.c.h.b16 %v776
    %v937 = vunpack.c.l.b16 %v777
    %v938 = vunpack.c.h.b16 %v777
    %v939 = vunpack.c.l.b16 %v778
    %v940 = vunpack.c.h.b16 %v778
    %v941 = vunpack.c.l.b16 %v779
    %v942 = vunpack.c.h.b16 %v779
    %v943 = vunpack.c.l.b16 %v780
    %v944 = vunpack.c.h.b16 %v780
    %v945 = vunpack.c.l.b16 %v781
    %v946 = vunpack.c.h.b16 %v781
    %v947 = vunpack.c.l.b16 %v782
    %v948 = vunpack.c.h.b16 %v782
    %v949 = vunpack.c.l.b16 %v783
    %v950 = vunpack.c.h.b16 %v783
    %v951 = vunpack.c.l.b16 %v784
    %v952 = vunpack.c.h.b16 %v784
    %v953 = vunpack.c.l.b16 %v785
    %v954 = vunpack.c.h.b16 %v785
    %v955 = vunpack.c.l.b16 %v786
    %v956 = vunpack.c.h.b16 %v786
    %v957 = vunpack.c.l.b16 %v787
    %v958 = vunpack.c.h.b16 %v787
    %v959 = vunpack.c.l.b16 %v788
    %v960 = vunpack.c.h.b16 %v788
    %v961 = vunpack.c.l.b16 %v789
    %v962 = vunpack.c.h.b16 %v789
    %v963 = vunpack.c.l.b16 %v790
    %v964 = vunpack.c.h.b16 %v790
    %v965 = vunpack.c.l.b16 %v791
    %v966 = vunpack.c.h.b16 %v791
    %v967 = vunpack.c.l.b16 %v792
    %v968 = vunpack.c.h.b16 %v792
    %v969 = vunpack.c.l.b16 %v793
    %v970 = vunpack.c.h.b16 %v793
    %v971 = vunpack.c.l.b16 %v794
    %v972 = vunpack.c.h.b16 %v794
    %v973 = vunpack.c.l.b16 %v795
    %v974 = vunpack.c.h.b16 %v795
    %v975 = vunpack.c.l.b16 %v796
    %v976 = vunpack.c.h.b16 %v796
    %v977 = vunpack.c.l.b16 %v797
    %v978 = vunpack.c.h.b16 %v797
    %v979 = vunpack.c.l.b16 %v798
    %v980 = vunpack.c.h.b16 %v798
    %v981 = vunpack.c.l.b16 %v799
    %v982 = vunpack.c.h.b16 %v799
    %v983 = vunpack.c.l.b16 %v800
    %v984 = vunpack.c.h.b16 %v800
    %v985 = vunpack.c.l.b16 %v801
    %v986 = vunpack.c.h.b16 %v801
    %v987 = vunpack.c.l.b16 %v802
    %v988 = vunpack.c.h.b16 %v802
    %v989 = vunpack.c.l.b16 %v803
    %v990 = vunpack.c.h.b16 %v803
    %v991 = vunpack.c.l.b16 %v804
    %v992 = vunpack.c.h.b16 %v804
    %v993 = vunpack.c.l.b16 %v805
    %v994 = vunpack.c.h.b16 %v805
    %v995 = vunpack.c.l.b16 %v806
    %v996 = vunpack.c.h.b16 %v806
    %v997 = vunpack.c.l.b16 %v807
    %v998 = vunpack.c.h.b16 %v807
    %v999 = vunpack.c.l.b16 %v808
    %v1000 = vunpack.c.h.b16 %v808
    %v1001 = vunpack.c.l.b16 %v809
    %v1002 = vunpack.c.h.b16 %v809
    %v1003 = vunpack.c.l.b16 %v810
    %v1004 = vunpack.c.h.b16 %v810
    %v1005 = vunpack.c.l.b16 %v811
    %v1006 = vunpack.c.h.b16 %v811
    %v1007 = vunpack.c.l.b16 %v812
    %v1008 = vunpack.c.h.b16 %v812
    %v1009 = vunpack.c.l.b16 %v813
    %v1010 = vunpack.c.h.b16 %v813
    %v1011 = vunpack.c.l.b16 %v814
    %v1012 = vunpack.c.h.b16 %v814
    %v1013 = vunpack.c.l.b16 %v815
    %v1014 = vunpack.c.h.b16 %v815
    %v1015 = vunpack.c.l.b16 %v816
    %v1016 = vunpack.c.h.b16 %v816
    %v1017 = vunpack.c.l.b16 %v817
    %v1018 = vunpack.c.h.b16 %v817
    %v1019 = vunpack.c.l.b16 %v818
    %v1020 = vunpack.c.h.b16 %v818
    %v1021 = vunpack.c.l.b16 %v819
    %v1022 = vunpack.c.h.b16 %v819
    %v1023 = vunpack.c.l.b16 %v820
    %v1024 = vunpack.c.h.b16 %v820
    %v1025 = vpack.c.b16 %v899, %v897
    %v1026 = vpack.c.b16 %v900, %v898
    %v1027 = vpack.c.b16 %v903, %v901
    %v1028 = vpack.c.b16 %v904, %v902
    %v1029 = vpack.c.b16 %v907, %v905
    %v1030 = vpack.c.b16 %v908, %v906
    %v1031 = vpack.c.b16 %v911, %v909
    %v1032 = vpack.c.b16 %v912, %v910
    %v1033 = vpack.c.b16 %v915, %v913
    %v1034 = vpack.c.b16 %v916, %v914
    %v1035 = vpack.c.b16 %v919, %v917
    %v1036 = vpack.c.b16 %v920, %v918
    %v1037 = vpack.c.b16 %v923, %v921
    %v1038 = vpack.c.b16 %v924, %v922
    %v1039 = vpack.c.b16 %v927, %v925
    %v1040 = vpack.c.b16 %v928, %v926
    %v1041 = vpack.c.b16 %v931, %v929
    %v1042 = vpack.c.b16 %v932, %v930
    %v1043 = vpack.c.b16 %v935, %v933
    %v1044 = vpack.c.b16 %v936, %v934
    %v1045 = vpack.c.b16 %v939, %v937
    %v1046 = vpack.c.b16 %v940, %v938
    %v1047 = vpack.c.b16 %v943, %v941
    %v1048 = vpack.c.b16 %v944, %v942
    %v1049 = vpack.c.b16 %v947, %v945
    %v1050 = vpack.c.b16 %v948, %v946
    %v1051 = vpack.c.b16 %v951, %v949
    %v1052 = vpack.c.b16 %v952, %v950
    %v1053 = vpack.c.b16 %v955, %v953
    %v1054 = vpack.c.b16 %v956, %v954
    %v1055 = vpack.c.b16 %v959, %v957
    %v1056 = vpack.c.b16 %v960, %v958
    %v1057 = vpack.c.b16 %v963, %v961
    %v1058 = vpack.c.b16 %v964, %v962
    %v1059 = vpack.c.b16 %v967, %v965
    %v1060 = vpack.c.b16 %v968, %v966
    %v1061 = vpack.c.b16 %v971, %v969
    %v1062 = vpack.c.b16 %v972, %v970
    %v1063 = vpack.c.b16 %v975, %v973
    %v1064 = vpack.c.b16 %v976, %v974
    %v1065 = vpack.c.b16 %v979, %v977
    %v1066 = vpack.c.b16 %v980, %v978
    %v1067 = vpack.c.b16 %v983, %v981
    %v1068 = vpack.c.b16 %v984, %v982
    %v1069 = vpack.c.b16 %v987, %v985
    %v1070 = vpack.c.b16 %v988, %v986
    %v1071 = vpack.c.b16 %v991, %v989
    %v1072 = vpack.c.b16 %v992, %v990
    %v1073 = vpack.c.b16 %v995, %v993
    %v1074 = vpack.c.b16 %v996, %v994
    %v1075 = vpack.c.b16 %v999, %v997
    %v1076 = vpack.c.b16 %v1000, %v998
    %v1077 = vpack.c.b16 %v1003, %v1001
    %v1078 = vpack.c.b16 %v1004, %v1002
    %v1079 = vpack.c.b16 %v1007, %v1005
    %v1080 = vpack.c.b16 %v1008, %v1006
    %v1081 = vpack.c.b16 %v1011, %v1009
    %v1082 = vpack.c.b16 %v1012, %v1010
    %v1083 = vpack.c.b16 %v1015, %v1013
    %v1084 = vpack.c.b16 %v1016, %v1014
    %v1085 = vpack.c.b16 %v1019, %v1017
    %v1086 = vpack.c.b16 %v1020, %v1018
    %v1087 = vpack.c.b16 %v1023, %v1021
    %v1088 = vpack.c.b16 %v1024, %v1022
    %1153 = vmatprep.subr.bf16.mxu0 %v1040
    %1154 = vmatpush1.bf16.msra.mxu0 %v1039
    %1155 = vmatprep.subr.bf16.mxu0 %v1038
    %1156 = vmatpush1.bf16.msra.mxu0 %v1037
    %1157 = vmatprep.subr.bf16.mxu0 %v1036
    %1158 = vmatpush1.bf16.msra.mxu0 %v1035
    %1159 = vmatprep.subr.bf16.mxu0 %v1034
    %1160 = vmatpush1.bf16.msra.mxu0 %v1033
    %1161 = vmatprep.subr.bf16.mxu0 %v1032
    %1162 = vmatpush1.bf16.msra.mxu0 %v1031
    %1163 = vmatprep.subr.bf16.mxu0 %v1030
    %1164 = vmatpush1.bf16.msra.mxu0 %v1029
    %1165 = vmatprep.subr.bf16.mxu0 %v1028
    %1166 = vmatpush1.bf16.msra.mxu0 %v1027
    %1167 = vmatprep.subr.bf16.mxu0 %v1026
    %1168 = vmatpush1.bf16.msra.mxu0 %v1025
    %1169 = vmatprep.subr.bf16.mxu0 %v1056
    %1170 = vmatpush2.bf16.msra.mxu0 %v1055
    %1171 = vmatprep.subr.bf16.mxu0 %v1054
    %1172 = vmatpush2.bf16.msra.mxu0 %v1053
    %1173 = vmatprep.subr.bf16.mxu0 %v1052
    %1174 = vmatpush2.bf16.msra.mxu0 %v1051
    %1175 = vmatprep.subr.bf16.mxu0 %v1050
    %1176 = vmatpush2.bf16.msra.mxu0 %v1049
    %1177 = vmatprep.subr.bf16.mxu0 %v1048
    %1178 = vmatpush2.bf16.msra.mxu0 %v1047
    %1179 = vmatprep.subr.bf16.mxu0 %v1046
    %1180 = vmatpush2.bf16.msra.mxu0 %v1045
    %1181 = vmatprep.subr.bf16.mxu0 %v1044
    %1182 = vmatpush2.bf16.msra.mxu0 %v1043
    %1183 = vmatprep.subr.bf16.mxu0 %v1042
    %1184 = vmatpush2.bf16.msra.mxu0 %v1041
    %1185 = vmatprep.mubr.bf16.mxu0 %v754
    %1186 = vmatmul.mubr.bf16.gmra.mxu0 %v753
    %v1187 = vpop.f32.mrf.mxu0
    %v1188 = vadd.f32 %v826, %v1187
    %v1189 = vpop.f32.mrf.mxu0
    %v1190 = vadd.f32 %v830, %v1189
    %v1191 = vpop.f32.mrf.mxu0
    %v1192 = vadd.f32 %v826, %v1191
    %v1193 = vpop.f32.mrf.mxu0
    %v1194 = vadd.f32 %v830, %v1193
    %1195 = vdwg.mxu0
    %1196 = vmatprep.subr.bf16.mxu0 %v1072
    %1197 = vmatpush1.bf16.msra.mxu0 %v1071
    %1198 = vmatprep.subr.bf16.mxu0 %v1070
    %1199 = vmatpush1.bf16.msra.mxu0 %v1069
    %1200 = vmatprep.subr.bf16.mxu0 %v1068
    %1201 = vmatpush1.bf16.msra.mxu0 %v1067
    %1202 = vmatprep.subr.bf16.mxu0 %v1066
    %1203 = vmatpush1.bf16.msra.mxu0 %v1065
    %1204 = vmatprep.subr.bf16.mxu0 %v1064
    %1205 = vmatpush1.bf16.msra.mxu0 %v1063
    %1206 = vmatprep.subr.bf16.mxu0 %v1062
    %1207 = vmatpush1.bf16.msra.mxu0 %v1061
    %1208 = vmatprep.subr.bf16.mxu0 %v1060
    %1209 = vmatpush1.bf16.msra.mxu0 %v1059
    %1210 = vmatprep.subr.bf16.mxu0 %v1058
    %1211 = vmatpush1.bf16.msra.mxu0 %v1057
    %1212 = vmatprep.subr.bf16.mxu0 %v1088
    %1213 = vmatpush2.bf16.msra.mxu0 %v1087
    %1214 = vmatprep.subr.bf16.mxu0 %v1086
    %1215 = vmatpush2.bf16.msra.mxu0 %v1085
    %1216 = vmatprep.subr.bf16.mxu0 %v1084
    %1217 = vmatpush2.bf16.msra.mxu0 %v1083
    %1218 = vmatprep.subr.bf16.mxu0 %v1082
    %1219 = vmatpush2.bf16.msra.mxu0 %v1081
    %1220 = vmatprep.subr.bf16.mxu0 %v1080
    %1221 = vmatpush2.bf16.msra.mxu0 %v1079
    %1222 = vmatprep.subr.bf16.mxu0 %v1078
    %1223 = vmatpush2.bf16.msra.mxu0 %v1077
    %1224 = vmatprep.subr.bf16.mxu0 %v1076
    %1225 = vmatpush2.bf16.msra.mxu0 %v1075
    %1226 = vmatprep.subr.bf16.mxu0 %v1074
    %1227 = vmatpush2.bf16.msra.mxu0 %v1073
    %1228 = vmatprep.mubr.bf16.mxu0 %v756
    %1229 = vmatmul.mubr.bf16.gmra.mxu0 %v755
    %v1230 = vpop.f32.mrf.mxu0
    %v1231 = vadd.f32 %v1188, %v1230
    %v1232 = vpop.f32.mrf.mxu0
    %v1233 = vadd.f32 %v1190, %v1232
    %v1234 = vpop.f32.mrf.mxu0
    %v1235 = vadd.f32 %v1192, %v1234
    %v1236 = vpop.f32.mrf.mxu0
    %v1237 = vadd.f32 %v1194, %v1236
    %1238 = vdwg.mxu0
    %v1239 = vmax.f32 %v1231, 0.0
    %v1240 = vmax.f32 %v1233, 0.0
    %v1241 = vmax.f32 %v1235, 0.0
    %v1242 = vmax.f32 %v1237, 0.0
    %v1243 = vpack.c.bf16 %v1241, %v1239
    %v1244 = vpack.c.bf16 %v1242, %v1240
    %v1245 = vld [vmem:[#allocation7] sm:$0xf]
    %v1246 = vld [vmem:[#allocation7 + $0x4] sm:$0xf]
    %v1247 = vld [vmem:[#allocation7 + $0x8] sm:$0xf]
    %v1248 = vld [vmem:[#allocation7 + $0xc] sm:$0xf]
    %v1249 = vld [vmem:[#allocation7 + $0x10] sm:$0xf]
    %v1250 = vld [vmem:[#allocation7 + $0x14] sm:$0xf]
    %v1251 = vld [vmem:[#allocation7 + $0x18] sm:$0xf]
    %v1252 = vld [vmem:[#allocation7 + $0x1c] sm:$0xf]
    %v1253 = vld [vmem:[#allocation7 + $0x20] sm:$0xf]
    %v1254 = vld [vmem:[#allocation7 + $0x24] sm:$0xf]
    %v1255 = vld [vmem:[#allocation7 + $0x28] sm:$0xf]
    %v1256 = vld [vmem:[#allocation7 + $0x2c] sm:$0xf]
    %v1257 = vld [vmem:[#allocation7 + $0x30] sm:$0xf]
    %v1258 = vld [vmem:[#allocation7 + $0x34] sm:$0xf]
    %v1259 = vld [vmem:[#allocation7 + $0x38] sm:$0xf]
    %v1260 = vld [vmem:[#allocation7 + $0x3c] sm:$0xf]
    %v1261 = vld [vmem:[#allocation7 + $0x40] sm:$0xf]
    %v1262 = vld [vmem:[#allocation7 + $0x44] sm:$0xf]
    %v1263 = vld [vmem:[#allocation7 + $0x48] sm:$0xf]
    %v1264 = vld [vmem:[#allocation7 + $0x4c] sm:$0xf]
    %v1265 = vld [vmem:[#allocation7 + $0x50] sm:$0xf]
    %v1266 = vld [vmem:[#allocation7 + $0x54] sm:$0xf]
    %v1267 = vld [vmem:[#allocation7 + $0x58] sm:$0xf]
    %v1268 = vld [vmem:[#allocation7 + $0x5c] sm:$0xf]
    %v1269 = vld [vmem:[#allocation7 + $0x60] sm:$0xf]
    %v1270 = vld [vmem:[#allocation7 + $0x64] sm:$0xf]
    %v1271 = vld [vmem:[#allocation7 + $0x68] sm:$0xf]
    %v1272 = vld [vmem:[#allocation7 + $0x6c] sm:$0xf]
    %v1273 = vld [vmem:[#allocation7 + $0x70] sm:$0xf]
    %v1274 = vld [vmem:[#allocation7 + $0x74] sm:$0xf]
    %v1275 = vld [vmem:[#allocation7 + $0x78] sm:$0xf]
    %v1276 = vld [vmem:[#allocation7 + $0x7c] sm:$0xf]
    %v1277 = vld [vmem:[%s8] sm:$0x1]
    %v1279 = vlaneseq
    %v1280 = vshrl.u32 %v1279, 7
    %v1281 = vsub.s32 0, %v1280
    %v1282 = vrot.slane %v1277, %v1281
    %v1316 = vunpack.c.l.b16 %v1245
    %v1317 = vunpack.c.l.b16 %v1246
    %v1318 = vunpack.c.l.b16 %v1247
    %v1319 = vunpack.c.l.b16 %v1248
    %v1320 = vunpack.c.l.b16 %v1249
    %v1321 = vunpack.c.l.b16 %v1250
    %v1322 = vunpack.c.l.b16 %v1251
    %v1323 = vunpack.c.l.b16 %v1252
    %v1324 = vunpack.c.l.b16 %v1253
    %v1325 = vunpack.c.l.b16 %v1254
    %v1326 = vunpack.c.l.b16 %v1255
    %v1327 = vunpack.c.l.b16 %v1256
    %v1328 = vunpack.c.l.b16 %v1257
    %v1329 = vunpack.c.l.b16 %v1258
    %v1330 = vunpack.c.l.b16 %v1259
    %v1331 = vunpack.c.l.b16 %v1260
    %v1332 = vunpack.c.l.b16 %v1261
    %v1333 = vunpack.c.l.b16 %v1262
    %v1334 = vunpack.c.l.b16 %v1263
    %v1335 = vunpack.c.l.b16 %v1264
    %v1336 = vunpack.c.l.b16 %v1265
    %v1337 = vunpack.c.l.b16 %v1266
    %v1338 = vunpack.c.l.b16 %v1267
    %v1339 = vunpack.c.l.b16 %v1268
    %v1340 = vunpack.c.l.b16 %v1269
    %v1341 = vunpack.c.l.b16 %v1270
    %v1342 = vunpack.c.l.b16 %v1271
    %v1343 = vunpack.c.l.b16 %v1272
    %v1344 = vunpack.c.l.b16 %v1273
    %v1345 = vunpack.c.l.b16 %v1274
    %v1346 = vunpack.c.l.b16 %v1275
    %v1347 = vunpack.c.l.b16 %v1276
    %v1348 = vpack.c.b16 %v1317, %v1316
    %v1349 = vpack.c.b16 %v1319, %v1318
    %v1350 = vpack.c.b16 %v1321, %v1320
    %v1351 = vpack.c.b16 %v1323, %v1322
    %v1352 = vpack.c.b16 %v1325, %v1324
    %v1353 = vpack.c.b16 %v1327, %v1326
    %v1354 = vpack.c.b16 %v1329, %v1328
    %v1355 = vpack.c.b16 %v1331, %v1330
    %v1356 = vpack.c.b16 %v1333, %v1332
    %v1357 = vpack.c.b16 %v1335, %v1334
    %v1358 = vpack.c.b16 %v1337, %v1336
    %v1359 = vpack.c.b16 %v1339, %v1338
    %v1360 = vpack.c.b16 %v1341, %v1340
    %v1361 = vpack.c.b16 %v1343, %v1342
    %v1362 = vpack.c.b16 %v1345, %v1344
    %v1363 = vpack.c.b16 %v1347, %v1346
    %1380 = vmatprep.subr.bf16.mxu0 0
    %1381 = vmatpush1.bf16.msra.mxu0 %v1355
    %1382 = vmatprep.subr.bf16.mxu0 0
    %1383 = vmatpush1.bf16.msra.mxu0 %v1354
    %1384 = vmatprep.subr.bf16.mxu0 0
    %1385 = vmatpush1.bf16.msra.mxu0 %v1353
    %1386 = vmatprep.subr.bf16.mxu0 0
    %1387 = vmatpush1.bf16.msra.mxu0 %v1352
    %1388 = vmatprep.subr.bf16.mxu0 0
    %1389 = vmatpush1.bf16.msra.mxu0 %v1351
    %1390 = vmatprep.subr.bf16.mxu0 0
    %1391 = vmatpush1.bf16.msra.mxu0 %v1350
    %1392 = vmatprep.subr.bf16.mxu0 0
    %1393 = vmatpush1.bf16.msra.mxu0 %v1349
    %1394 = vmatprep.subr.bf16.mxu0 0
    %1395 = vmatpush1.bf16.msra.mxu0 %v1348
    %1396 = vmatprep.subr.bf16.mxu0 0
    %1397 = vmatpush2.bf16.msra.mxu0 %v1363
    %1398 = vmatprep.subr.bf16.mxu0 0
    %1399 = vmatpush2.bf16.msra.mxu0 %v1362
    %1400 = vmatprep.subr.bf16.mxu0 0
    %1401 = vmatpush2.bf16.msra.mxu0 %v1361
    %1402 = vmatprep.subr.bf16.mxu0 0
    %1403 = vmatpush2.bf16.msra.mxu0 %v1360
    %1404 = vmatprep.subr.bf16.mxu0 0
    %1405 = vmatpush2.bf16.msra.mxu0 %v1359
    %1406 = vmatprep.subr.bf16.mxu0 0
    %1407 = vmatpush2.bf16.msra.mxu0 %v1358
    %1408 = vmatprep.subr.bf16.mxu0 0
    %1409 = vmatpush2.bf16.msra.mxu0 %v1357
    %1410 = vmatprep.subr.bf16.mxu0 0
    %1411 = vmatpush2.bf16.msra.mxu0 %v1356
    %1412 = vmatprep.mubr.bf16.mxu0 %v1244
    %1413 = vmatmul.mubr.bf16.gmra.mxu0 %v1243
    %v1414 = vpop.f32.mrf.mxu0
    %v1415 = vadd.f32 %v1282, %v1414
    %v1416 = vpop.f32.mrf.mxu0
    %v1417 = vpop.f32.mrf.mxu0
    %v1418 = vadd.f32 %v1282, %v1417
    %v1419 = vpop.f32.mrf.mxu0
    %1420 = vdwg.mxu0
    %v1421 = vxor.u32 %v1415, 2147483648
    %v1422 = vxor.u32 %v1418, 2147483648
    %v1423 = vmul.f32 %v1421, 1.442695
    %v1424 = vpow.pop %v1423
    %v1425 = vmul.f32 %v1422, 1.442695
    %v1426 = vpow.pop %v1425
    %v1427 = vadd.f32 %v1424, 1.0
    %v1428 = vadd.f32 %v1426, 1.0
    %v1429 = vrcp.pop %v1427
    %v1430 = vmul.f32 1.0, %v1429
    %v1431 = vrcp.pop %v1428
    %v1432 = vmul.f32 1.0, %v1431
    %1433 = vst [vmem:[%s9] sm:$0xff] %v1430
    %1434 = vst [vmem:[%s9 + $0x8] sm:$0xff] %v1432
    // Predicated region
    $region54: #{_net_forward_impl.1} parent=1 // pred_check
      _
    $region55: #{_net_forward_impl.1} parent=1 // pred_check_branch
      %1436 = sbr.rel (0) target = $region57
    $region56: #{_net_forward_impl.1} parent=1 // pred_region
      _
    $region57: #{_net_forward_impl.1} parent=1 // pred_fallthru
      _
    // Predicated region
    $region58: #{_net_forward_impl.1} parent=1 // pred_check
      _
    $region59: #{_net_forward_impl.1} parent=1 // pred_check_branch
      %1438 = sbr.rel (0) target = $region61
    $region60: #{_net_forward_impl.1} parent=1 // pred_region
      _
    $region61: #{_net_forward_impl.1} parent=1 // pred_fallthru
      _
    %1439 = vsyncpa [#allocation3], 1
    %1440 = vsyncpa [#allocation5], 1
    %1441 = vsyncpa [#allocation8], 1

// kernel: _net_forward_impl.1
$region0: #{_net_forward_impl.1}
  #allocation0 [shape = 'u32[]', space=smem, size = 0x4, offset = 0x4, fixed_abs, tag = 'smem constant byte address 0x4 - core index']
  #allocation1 [shape = 'u32[144,128]{1,0:T(1,128)}', space=vmem, size = 0x12000, scoped, tag = 'internal scratch']
  %s0 = inlined_call_operand.vmem [shape: bf16[16,128], index: 0, kind: input, shape index: {}]
  %s1 = inlined_call_operand.hbm [shape: bf16[128,256], index: 1, kind: input, shape index: {}]
  %s2 = inlined_call_operand.vmem [shape: f32[1,256], index: 2, kind: input, shape index: {}]
  %s3 = inlined_call_operand.hbm [shape: bf16[256,512], index: 3, kind: input, shape index: {}]
  %s4 = inlined_call_operand.vmem [shape: f32[1,512], index: 4, kind: input, shape index: {}]
  %s5 = inlined_call_operand.hbm [shape: bf16[512,256], index: 5, kind: input, shape index: {}]
  %s6 = inlined_call_operand.vmem [shape: f32[1,256], index: 6, kind: input, shape index: {}]
  %s7 = inlined_call_operand.hbm [shape: bf16[256,128], index: 7, kind: input, shape index: {}]
  %s8 = inlined_call_operand.vmem [shape: f32[1,128], index: 8, kind: input, shape index: {}]
  %s9 = inlined_call_operand.vmem [shape: f32[16,128], index: 9, kind: output, shape index: {}]
  %s10 = sld [smem:[#allocation0]]
  $region62: #{_net_forward_impl.1} parent=0
    _
  %s12 = ssub.s32 1, %s10
  %s13 = scalar_select 0, %s12, %s10
  $region1: #{_net_forward_impl.1} parent=0
    #allocation2 [shape = 'u8[65536]{0}', space=vmem, size = 0x10000, scoped, tag = 'input window, operand 1, single buffered']
    #allocation3 [shape = 's32[1]{0}', space=sflag, size = 0x4, scoped, tag = 'scoped memory for _net_forward_impl.1']
    #allocation4 [shape = 'u8[262144]{0}', space=vmem, size = 0x40000, scoped, tag = 'input window, operand 3, single buffered']
    #allocation5 [shape = 's32[1]{0}', space=sflag, size = 0x4, scoped, tag = 'scoped memory for _net_forward_impl.1']
    #allocation6 [shape = 'u8[262144]{0}', space=vmem, size = 0x40000, scoped, tag = 'input window, operand 5, single buffered']
    #allocation7 [shape = 'u8[65536]{0}', space=vmem, size = 0x10000, scoped, tag = 'input window, operand 7, single buffered']
    #allocation8 [shape = 's32[1]{0}', space=sflag, size = 0x4, scoped, tag = 'scoped memory for _net_forward_impl.1']
    %14 = vsyncpa [#allocation3], 0
    %15 = vsyncpa [#allocation5], 0
    %16 = vsyncpa [#allocation8], 0
    // Predicated region
    $region2: #{_net_forward_impl.1} parent=1 // pred_check
      _
    $region3: #{_net_forward_impl.1} parent=1 // pred_check_branch
      %18 = sbr.rel (0) target = $region5
    $region4: #{_net_forward_impl.1} parent=1 // pred_region
      _
    $region5: #{_net_forward_impl.1} parent=1 // pred_fallthru
      _
    // Predicated region
    $region6: #{_net_forward_impl.1} parent=1 // pred_check
      _
    $region7: #{_net_forward_impl.1} parent=1 // pred_check_branch
      %20 = sbr.rel (0) target = $region9
    $region8: #{_net_forward_impl.1} parent=1 // pred_region
      %s22 = ssub.s32 2048, 2048
      %23 = vsyncadd [#allocation3], %s22
      %s24 = sshll.u32 [#allocation2], 4
      %s25 = int_to_ptr.vmem [resolvable:$true] %s24
      %30 = dma.hbm_to_vmem [thread:$0]  %s1, 2048, %s25, [#allocation3], 128, 128, 8
    $region9: #{_net_forward_impl.1} parent=1 // pred_fallthru
      _
    // Predicated region
    $region10: #{_net_forward_impl.1} parent=1 // pred_check
      _
    $region11: #{_net_forward_impl.1} parent=1 // pred_check_branch
      %32 = sbr.rel (0) target = $region13
    $region12: #{_net_forward_impl.1} parent=1 // pred_region
      _
    $region13: #{_net_forward_impl.1} parent=1 // pred_fallthru
      _
    // Predicated region
    $region14: #{_net_forward_impl.1} parent=1 // pred_check
      _
    $region15: #{_net_forward_impl.1} parent=1 // pred_check_branch
      %34 = sbr.rel (0) target = $region17
    $region16: #{_net_forward_impl.1} parent=1 // pred_region
      %s36 = ssub.s32 8192, 8192
      %37 = vsyncadd [#allocation5], %s36
      %s38 = sshll.u32 [#allocation4], 4
      %s39 = int_to_ptr.vmem [resolvable:$true] %s38
      %44 = dma.hbm_to_vmem [thread:$0]  %s3, 8192, %s39, [#allocation5], 256, 256, 16
    $region17: #{_net_forward_impl.1} parent=1 // pred_fallthru
      _
    // Predicated region
    $region18: #{_net_forward_impl.1} parent=1 // pred_check
      _
    $region19: #{_net_forward_impl.1} parent=1 // pred_check_branch
      %46 = sbr.rel (0) target = $region21
    $region20: #{_net_forward_impl.1} parent=1 // pred_region
      _
    $region21: #{_net_forward_impl.1} parent=1 // pred_fallthru
      _
    // Predicated region
    $region22: #{_net_forward_impl.1} parent=1 // pred_check
      _
    $region23: #{_net_forward_impl.1} parent=1 // pred_check_branch
      %48 = sbr.rel (0) target = $region25
    $region24: #{_net_forward_impl.1} parent=1 // pred_region
      %s50 = ssub.s32 8192, 8192
      %51 = vsyncadd [#allocation5], %s50
      %s52 = sshll.u32 [#allocation6], 4
      %s53 = int_to_ptr.vmem [resolvable:$true] %s52
      %58 = dma.hbm_to_vmem [thread:$0]  %s5, 8192, %s53, [#allocation5], 128, 128, 8
    $region25: #{_net_forward_impl.1} parent=1 // pred_fallthru
      _
    // Predicated region
    $region26: #{_net_forward_impl.1} parent=1 // pred_check
      _
    $region27: #{_net_forward_impl.1} parent=1 // pred_check_branch
      %60 = sbr.rel (0) target = $region29
    $region28: #{_net_forward_impl.1} parent=1 // pred_region
      _
    $region29: #{_net_forward_impl.1} parent=1 // pred_fallthru
      _
    // Predicated region
    $region30: #{_net_forward_impl.1} parent=1 // pred_check
      _
    $region31: #{_net_forward_impl.1} parent=1 // pred_check_branch
      %62 = sbr.rel (0) target = $region33
    $region32: #{_net_forward_impl.1} parent=1 // pred_region
      %s64 = ssub.s32 2048, 2048
      %65 = vsyncadd [#allocation8], %s64
      %s66 = sshll.u32 [#allocation7], 4
      %s67 = int_to_ptr.vmem [resolvable:$true] %s66
      %72 = dma.hbm_to_vmem [thread:$0]  %s7, 2048, %s67, [#allocation8], 64, 64, 4
    $region33: #{_net_forward_impl.1} parent=1 // pred_fallthru
      _
    // Predicated region
    $region34: #{_net_forward_impl.1} parent=1 // pred_check
      _
    $region35: #{_net_forward_impl.1} parent=1 // pred_check_branch
      %74 = sbr.rel (0) target = $region37
    $region36: #{_net_forward_impl.1} parent=1 // pred_region
      _
    $region37: #{_net_forward_impl.1} parent=1 // pred_fallthru
      _
    // Predicated region
    $region38: #{_net_forward_impl.1} parent=1 // pred_check
      _
    $region39: #{_net_forward_impl.1} parent=1 // pred_check_branch
      %76 = sbr.rel (0) target = $region41
    $region40: #{_net_forward_impl.1} parent=1 // pred_region
      %77 = dma.done [#allocation3], 2048
    $region41: #{_net_forward_impl.1} parent=1 // pred_fallthru
      _
    // Predicated region
    $region42: #{_net_forward_impl.1} parent=1 // pred_check
      _
    $region43: #{_net_forward_impl.1} parent=1 // pred_check_branch
      %79 = sbr.rel (0) target = $region45
    $region44: #{_net_forward_impl.1} parent=1 // pred_region
      %80 = dma.done [#allocation5], 8192
    $region45: #{_net_forward_impl.1} parent=1 // pred_fallthru
      _
    // Predicated region
    $region46: #{_net_forward_impl.1} parent=1 // pred_check
      _
    $region47: #{_net_forward_impl.1} parent=1 // pred_check_branch
      %82 = sbr.rel (0) target = $region49
    $region48: #{_net_forward_impl.1} parent=1 // pred_region
      %83 = dma.done [#allocation5], 8192
    $region49: #{_net_forward_impl.1} parent=1 // pred_fallthru
      _
    // Predicated region
    $region50: #{_net_forward_impl.1} parent=1 // pred_check
      _
    $region51: #{_net_forward_impl.1} parent=1 // pred_check_branch
      %85 = sbr.rel (0) target = $region53
    $region52: #{_net_forward_impl.1} parent=1 // pred_region
      %86 = dma.done [#allocation8], 2048
    $region53: #{_net_forward_impl.1} parent=1 // pred_fallthru
      _
    %v88 = vld [vmem:[%s0] sm:$0xf]
    %v89 = vld [vmem:[%s0 + $0x4] sm:$0xf]
    %v90 = vld [vmem:[#allocation2] sm:$0xff]
    %v91 = vld [vmem:[#allocation2 + $0x8] sm:$0xff]
    %v92 = vld [vmem:[#allocation2 + $0x10] sm:$0xff]
    %v93 = vld [vmem:[#allocation2 + $0x18] sm:$0xff]
    %v94 = vld [vmem:[#allocation2 + $0x20] sm:$0xff]
    %v95 = vld [vmem:[#allocation2 + $0x28] sm:$0xff]
    %v96 = vld [vmem:[#allocation2 + $0x30] sm:$0xff]
    %v97 = vld [vmem:[#allocation2 + $0x38] sm:$0xff]
    %v98 = vld [vmem:[#allocation2 + $0x40] sm:$0xff]
    %v99 = vld [vmem:[#allocation2 + $0x48] sm:$0xff]
    %v100 = vld [vmem:[#allocation2 + $0x50] sm:$0xff]
    %v101 = vld [vmem:[#allocation2 + $0x58] sm:$0xff]
    %v102 = vld [vmem:[#allocation2 + $0x60] sm:$0xff]
    %v103 = vld [vmem:[#allocation2 + $0x68] sm:$0xff]
    %v104 = vld [vmem:[#allocation2 + $0x70] sm:$0xff]
    %v105 = vld [vmem:[#allocation2 + $0x78] sm:$0xff]
    %v106 = vld [vmem:[%s2] sm:$0x3]
    %v108 = vlaneseq
    %v109 = vshrl.u32 %v108, 7
    %v110 = vsub.s32 0, %v109
    %v111 = vrot.slane %v106, %v110
    %v112 = vlaneseq
    %v113 = vshrl.u32 %v112, 7
    %v114 = vsub.s32 1, %v113
    %v115 = vrot.slane %v106, %v114
    %v120 = vunpack.c.l.b16 %v88
    %v121 = vunpack.c.l.b16 %v89
    %v122 = vpack.c.b16 %v121, %v120
    %v140 = vunpack.c.l.b16 %v90
    %v141 = vunpack.c.h.b16 %v90
    %v142 = vunpack.c.l.b16 %v91
    %v143 = vunpack.c.h.b16 %v91
    %v144 = vunpack.c.l.b16 %v92
    %v145 = vunpack.c.h.b16 %v92
    %v146 = vunpack.c.l.b16 %v93
    %v147 = vunpack.c.h.b16 %v93
    %v148 = vunpack.c.l.b16 %v94
    %v149 = vunpack.c.h.b16 %v94
    %v150 = vunpack.c.l.b16 %v95
    %v151 = vunpack.c.h.b16 %v95
    %v152 = vunpack.c.l.b16 %v96
    %v153 = vunpack.c.h.b16 %v96
    %v154 = vunpack.c.l.b16 %v97
    %v155 = vunpack.c.h.b16 %v97
    %v156 = vunpack.c.l.b16 %v98
    %v157 = vunpack.c.h.b16 %v98
    %v158 = vunpack.c.l.b16 %v99
    %v159 = vunpack.c.h.b16 %v99
    %v160 = vunpack.c.l.b16 %v100
    %v161 = vunpack.c.h.b16 %v100
    %v162 = vunpack.c.l.b16 %v101
    %v163 = vunpack.c.h.b16 %v101
    %v164 = vunpack.c.l.b16 %v102
    %v165 = vunpack.c.h.b16 %v102
    %v166 = vunpack.c.l.b16 %v103
    %v167 = vunpack.c.h.b16 %v103
    %v168 = vunpack.c.l.b16 %v104
    %v169 = vunpack.c.h.b16 %v104
    %v170 = vunpack.c.l.b16 %v105
    %v171 = vunpack.c.h.b16 %v105
    %v172 = vpack.c.b16 %v142, %v140
    %v173 = vpack.c.b16 %v143, %v141
    %v174 = vpack.c.b16 %v146, %v144
    %v175 = vpack.c.b16 %v147, %v145
    %v176 = vpack.c.b16 %v150, %v148
    %v177 = vpack.c.b16 %v151, %v149
    %v178 = vpack.c.b16 %v154, %v152
    %v179 = vpack.c.b16 %v155, %v153
    %v180 = vpack.c.b16 %v158, %v156
    %v181 = vpack.c.b16 %v159, %v157
    %v182 = vpack.c.b16 %v162, %v160
    %v183 = vpack.c.b16 %v163, %v161
    %v184 = vpack.c.b16 %v166, %v164
    %v185 = vpack.c.b16 %v167, %v165
    %v186 = vpack.c.b16 %v170, %v168
    %v187 = vpack.c.b16 %v171, %v169
    %204 = vmatprep.subr.bf16.mxu0 %v187
    %205 = vmatpush1.bf16.msra.mxu0 %v186
    %206 = vmatprep.subr.bf16.mxu0 %v185
    %207 = vmatpush1.bf16.msra.mxu0 %v184
    %208 = vmatprep.subr.bf16.mxu0 %v183
    %209 = vmatpush1.bf16.msra.mxu0 %v182
    %210 = vmatprep.subr.bf16.mxu0 %v181
    %211 = vmatpush1.bf16.msra.mxu0 %v180
    %212 = vmatprep.subr.bf16.mxu0 %v179
    %213 = vmatpush1.bf16.msra.mxu0 %v178
    %214 = vmatprep.subr.bf16.mxu0 %v177
    %215 = vmatpush1.bf16.msra.mxu0 %v176
    %216 = vmatprep.subr.bf16.mxu0 %v175
    %217 = vmatpush1.bf16.msra.mxu0 %v174
    %218 = vmatprep.subr.bf16.mxu0 %v173
    %219 = vmatpush1.bf16.msra.mxu0 %v172
    %220 = vmatprep.subr.bf16.mxu0 0
    %221 = vmatpush2.bf16.msra.mxu0 0
    %222 = vmatprep.subr.bf16.mxu0 0
    %223 = vmatpush2.bf16.msra.mxu0 0
    %224 = vmatprep.subr.bf16.mxu0 0
    %225 = vmatpush2.bf16.msra.mxu0 0
    %226 = vmatprep.subr.bf16.mxu0 0
    %227 = vmatpush2.bf16.msra.mxu0 0
    %228 = vmatprep.subr.bf16.mxu0 0
    %229 = vmatpush2.bf16.msra.mxu0 0
    %230 = vmatprep.subr.bf16.mxu0 0
    %231 = vmatpush2.bf16.msra.mxu0 0
    %232 = vmatprep.subr.bf16.mxu0 0
    %233 = vmatpush2.bf16.msra.mxu0 0
    %234 = vmatprep.subr.bf16.mxu0 0
    %235 = vmatpush2.bf16.msra.mxu0 0
    %236 = vmatprep.mubr.bf16.mxu0 0
    %237 = vmatmul.mubr.bf16.gmra.mxu0 %v122
    %v238 = vpop.f32.mrf.mxu0
    %v239 = vadd.f32 %v111, %v238
    %v240 = vpop.f32.mrf.mxu0
    %v241 = vadd.f32 %v115, %v240
    %v242 = vpop.f32.mrf.mxu0
    %v243 = vadd.f32 %v111, %v242
    %v244 = vpop.f32.mrf.mxu0
    %v245 = vadd.f32 %v115, %v244
    %246 = vdwg.mxu0
    %v247 = vmax.f32 %v239, 0.0
    %v248 = vmax.f32 %v241, 0.0
    %v249 = vmax.f32 %v243, 0.0
    %v250 = vmax.f32 %v245, 0.0
    %v251 = vpack.c.bf16 %v249, %v247
    %v252 = vpack.c.bf16 %v250, %v248
    %v253 = vld [vmem:[#allocation4] sm:$0xff]
    %v254 = vld [vmem:[#allocation4 + $0x8] sm:$0xff]
    %v255 = vld [vmem:[#allocation4 + $0x10] sm:$0xff]
    %v256 = vld [vmem:[#allocation4 + $0x18] sm:$0xff]
    %v257 = vld [vmem:[#allocation4 + $0x20] sm:$0xff]
    %v258 = vld [vmem:[#allocation4 + $0x28] sm:$0xff]
    %v259 = vld [vmem:[#allocation4 + $0x30] sm:$0xff]
    %v260 = vld [vmem:[#allocation4 + $0x38] sm:$0xff]
    %v261 = vld [vmem:[#allocation4 + $0x40] sm:$0xff]
    %v262 = vld [vmem:[#allocation4 + $0x48] sm:$0xff]
    %v263 = vld [vmem:[#allocation4 + $0x50] sm:$0xff]
    %v264 = vld [vmem:[#allocation4 + $0x58] sm:$0xff]
    %v265 = vld [vmem:[#allocation4 + $0x60] sm:$0xff]
    %v266 = vld [vmem:[#allocation4 + $0x68] sm:$0xff]
    %v267 = vld [vmem:[#allocation4 + $0x70] sm:$0xff]
    %v268 = vld [vmem:[#allocation4 + $0x78] sm:$0xff]
    %v269 = vld [vmem:[#allocation4 + $0x80] sm:$0xff]
    %v270 = vld [vmem:[#allocation4 + $0x88] sm:$0xff]
    %v271 = vld [vmem:[#allocation4 + $0x90] sm:$0xff]
    %v272 = vld [vmem:[#allocation4 + $0x98] sm:$0xff]
    %v273 = vld [vmem:[#allocation4 + $0xa0] sm:$0xff]
    %v274 = vld [vmem:[#allocation4 + $0xa8] sm:$0xff]
    %v275 = vld [vmem:[#allocation4 + $0xb0] sm:$0xff]
    %v276 = vld [vmem:[#allocation4 + $0xb8] sm:$0xff]
    %v277 = vld [vmem:[#allocation4 + $0xc0] sm:$0xff]
    %v278 = vld [vmem:[#allocation4 + $0xc8] sm:$0xff]
    %v279 = vld [vmem:[#allocation4 + $0xd0] sm:$0xff]
    %v280 = vld [vmem:[#allocation4 + $0xd8] sm:$0xff]
    %v281 = vld [vmem:[#allocation4 + $0xe0] sm:$0xff]
    %v282 = vld [vmem:[#allocation4 + $0xe8] sm:$0xff]
    %v283 = vld [vmem:[#allocation4 + $0xf0] sm:$0xff]
    %v284 = vld [vmem:[#allocation4 + $0xf8] sm:$0xff]
    %v285 = vld [vmem:[#allocation4 + $0x100] sm:$0xff]
    %v286 = vld [vmem:[#allocation4 + $0x108] sm:$0xff]
    %v287 = vld [vmem:[#allocation4 + $0x110] sm:$0xff]
    %v288 = vld [vmem:[#allocation4 + $0x118] sm:$0xff]
    %v289 = vld [vmem:[#allocation4 + $0x120] sm:$0xff]
    %v290 = vld [vmem:[#allocation4 + $0x128] sm:$0xff]
    %v291 = vld [vmem:[#allocation4 + $0x130] sm:$0xff]
    %v292 = vld [vmem:[#allocation4 + $0x138] sm:$0xff]
    %v293 = vld [vmem:[#allocation4 + $0x140] sm:$0xff]
    %v294 = vld [vmem:[#allocation4 + $0x148] sm:$0xff]
    %v295 = vld [vmem:[#allocation4 + $0x150] sm:$0xff]
    %v296 = vld [vmem:[#allocation4 + $0x158] sm:$0xff]
    %v297 = vld [vmem:[#allocation4 + $0x160] sm:$0xff]
    %v298 = vld [vmem:[#allocation4 + $0x168] sm:$0xff]
    %v299 = vld [vmem:[#allocation4 + $0x170] sm:$0xff]
    %v300 = vld [vmem:[#allocation4 + $0x178] sm:$0xff]
    %v301 = vld [vmem:[#allocation4 + $0x180] sm:$0xff]
    %v302 = vld [vmem:[#allocation4 + $0x188] sm:$0xff]
    %v303 = vld [vmem:[#allocation4 + $0x190] sm:$0xff]
    %v304 = vld [vmem:[#allocation4 + $0x198] sm:$0xff]
    %v305 = vld [vmem:[#allocation4 + $0x1a0] sm:$0xff]
    %v306 = vld [vmem:[#allocation4 + $0x1a8] sm:$0xff]
    %v307 = vld [vmem:[#allocation4 + $0x1b0] sm:$0xff]
    %v308 = vld [vmem:[#allocation4 + $0x1b8] sm:$0xff]
    %v309 = vld [vmem:[#allocation4 + $0x1c0] sm:$0xff]
    %v310 = vld [vmem:[#allocation4 + $0x1c8] sm:$0xff]
    %v311 = vld [vmem:[#allocation4 + $0x1d0] sm:$0xff]
    %v312 = vld [vmem:[#allocation4 + $0x1d8] sm:$0xff]
    %v313 = vld [vmem:[#allocation4 + $0x1e0] sm:$0xff]
    %v314 = vld [vmem:[#allocation4 + $0x1e8] sm:$0xff]
    %v315 = vld [vmem:[#allocation4 + $0x1f0] sm:$0xff]
    %v316 = vld [vmem:[#allocation4 + $0x1f8] sm:$0xff]
    %v317 = vld [vmem:[%s4] sm:$0xf]
    %v319 = vlaneseq
    %v320 = vshrl.u32 %v319, 7
    %v321 = vsub.s32 0, %v320
    %v322 = vrot.slane %v317, %v321
    %v323 = vlaneseq
    %v324 = vshrl.u32 %v323, 7
    %v325 = vsub.s32 1, %v324
    %v326 = vrot.slane %v317, %v325
    %v327 = vlaneseq
    %v328 = vshrl.u32 %v327, 7
    %v329 = vsub.s32 2, %v328
    %v330 = vrot.slane %v317, %v329
    %v331 = vlaneseq
    %v332 = vshrl.u32 %v331, 7
    %v333 = vsub.s32 3, %v332
    %v334 = vrot.slane %v317, %v333
    %v403 = vunpack.c.l.b16 %v253
    %v404 = vunpack.c.h.b16 %v253
    %v405 = vunpack.c.l.b16 %v254
    %v406 = vunpack.c.h.b16 %v254
    %v407 = vunpack.c.l.b16 %v255
    %v408 = vunpack.c.h.b16 %v255
    %v409 = vunpack.c.l.b16 %v256
    %v410 = vunpack.c.h.b16 %v256
    %v411 = vunpack.c.l.b16 %v257
    %v412 = vunpack.c.h.b16 %v257
    %v413 = vunpack.c.l.b16 %v258
    %v414 = vunpack.c.h.b16 %v258
    %v415 = vunpack.c.l.b16 %v259
    %v416 = vunpack.c.h.b16 %v259
    %v417 = vunpack.c.l.b16 %v260
    %v418 = vunpack.c.h.b16 %v260
    %v419 = vunpack.c.l.b16 %v261
    %v420 = vunpack.c.h.b16 %v261
    %v421 = vunpack.c.l.b16 %v262
    %v422 = vunpack.c.h.b16 %v262
    %v423 = vunpack.c.l.b16 %v263
    %v424 = vunpack.c.h.b16 %v263
    %v425 = vunpack.c.l.b16 %v264
    %v426 = vunpack.c.h.b16 %v264
    %v427 = vunpack.c.l.b16 %v265
    %v428 = vunpack.c.h.b16 %v265
    %v429 = vunpack.c.l.b16 %v266
    %v430 = vunpack.c.h.b16 %v266
    %v431 = vunpack.c.l.b16 %v267
    %v432 = vunpack.c.h.b16 %v267
    %v433 = vunpack.c.l.b16 %v268
    %v434 = vunpack.c.h.b16 %v268
    %v435 = vunpack.c.l.b16 %v269
    %v436 = vunpack.c.h.b16 %v269
    %v437 = vunpack.c.l.b16 %v270
    %v438 = vunpack.c.h.b16 %v270
    %v439 = vunpack.c.l.b16 %v271
    %v440 = vunpack.c.h.b16 %v271
    %v441 = vunpack.c.l.b16 %v272
    %v442 = vunpack.c.h.b16 %v272
    %v443 = vunpack.c.l.b16 %v273
    %v444 = vunpack.c.h.b16 %v273
    %v445 = vunpack.c.l.b16 %v274
    %v446 = vunpack.c.h.b16 %v274
    %v447 = vunpack.c.l.b16 %v275
    %v448 = vunpack.c.h.b16 %v275
    %v449 = vunpack.c.l.b16 %v276
    %v450 = vunpack.c.h.b16 %v276
    %v451 = vunpack.c.l.b16 %v277
    %v452 = vunpack.c.h.b16 %v277
    %v453 = vunpack.c.l.b16 %v278
    %v454 = vunpack.c.h.b16 %v278
    %v455 = vunpack.c.l.b16 %v279
    %v456 = vunpack.c.h.b16 %v279
    %v457 = vunpack.c.l.b16 %v280
    %v458 = vunpack.c.h.b16 %v280
    %v459 = vunpack.c.l.b16 %v281
    %v460 = vunpack.c.h.b16 %v281
    %v461 = vunpack.c.l.b16 %v282
    %v462 = vunpack.c.h.b16 %v282
    %v463 = vunpack.c.l.b16 %v283
    %v464 = vunpack.c.h.b16 %v283
    %v465 = vunpack.c.l.b16 %v284
    %v466 = vunpack.c.h.b16 %v284
    %v467 = vunpack.c.l.b16 %v285
    %v468 = vunpack.c.h.b16 %v285
    %v469 = vunpack.c.l.b16 %v286
    %v470 = vunpack.c.h.b16 %v286
    %v471 = vunpack.c.l.b16 %v287
    %v472 = vunpack.c.h.b16 %v287
    %v473 = vunpack.c.l.b16 %v288
    %v474 = vunpack.c.h.b16 %v288
    %v475 = vunpack.c.l.b16 %v289
    %v476 = vunpack.c.h.b16 %v289
    %v477 = vunpack.c.l.b16 %v290
    %v478 = vunpack.c.h.b16 %v290
    %v479 = vunpack.c.l.b16 %v291
    %v480 = vunpack.c.h.b16 %v291
    %v481 = vunpack.c.l.b16 %v292
    %v482 = vunpack.c.h.b16 %v292
    %v483 = vunpack.c.l.b16 %v293
    %v484 = vunpack.c.h.b16 %v293
    %v485 = vunpack.c.l.b16 %v294
    %v486 = vunpack.c.h.b16 %v294
    %v487 = vunpack.c.l.b16 %v295
    %v488 = vunpack.c.h.b16 %v295
    %v489 = vunpack.c.l.b16 %v296
    %v490 = vunpack.c.h.b16 %v296
    %v491 = vunpack.c.l.b16 %v297
    %v492 = vunpack.c.h.b16 %v297
    %v493 = vunpack.c.l.b16 %v298
    %v494 = vunpack.c.h.b16 %v298
    %v495 = vunpack.c.l.b16 %v299
    %v496 = vunpack.c.h.b16 %v299
    %v497 = vunpack.c.l.b16 %v300
    %v498 = vunpack.c.h.b16 %v300
    %v499 = vunpack.c.l.b16 %v301
    %v500 = vunpack.c.h.b16 %v301
    %v501 = vunpack.c.l.b16 %v302
    %v502 = vunpack.c.h.b16 %v302
    %v503 = vunpack.c.l.b16 %v303
    %v504 = vunpack.c.h.b16 %v303
    %v505 = vunpack.c.l.b16 %v304
    %v506 = vunpack.c.h.b16 %v304
    %v507 = vunpack.c.l.b16 %v305
    %v508 = vunpack.c.h.b16 %v305
    %v509 = vunpack.c.l.b16 %v306
    %v510 = vunpack.c.h.b16 %v306
    %v511 = vunpack.c.l.b16 %v307
    %v512 = vunpack.c.h.b16 %v307
    %v513 = vunpack.c.l.b16 %v308
    %v514 = vunpack.c.h.b16 %v308
    %v515 = vunpack.c.l.b16 %v309
    %v516 = vunpack.c.h.b16 %v309
    %v517 = vunpack.c.l.b16 %v310
    %v518 = vunpack.c.h.b16 %v310
    %v519 = vunpack.c.l.b16 %v311
    %v520 = vunpack.c.h.b16 %v311
    %v521 = vunpack.c.l.b16 %v312
    %v522 = vunpack.c.h.b16 %v312
    %v523 = vunpack.c.l.b16 %v313
    %v524 = vunpack.c.h.b16 %v313
    %v525 = vunpack.c.l.b16 %v314
    %v526 = vunpack.c.h.b16 %v314
    %v527 = vunpack.c.l.b16 %v315
    %v528 = vunpack.c.h.b16 %v315
    %v529 = vunpack.c.l.b16 %v316
    %v530 = vunpack.c.h.b16 %v316
    %v531 = vpack.c.b16 %v407, %v403
    %v532 = vpack.c.b16 %v408, %v404
    %v533 = vpack.c.b16 %v409, %v405
    %v534 = vpack.c.b16 %v410, %v406
    %v535 = vpack.c.b16 %v415, %v411
    %v536 = vpack.c.b16 %v416, %v412
    %v537 = vpack.c.b16 %v417, %v413
    %v538 = vpack.c.b16 %v418, %v414
    %v539 = vpack.c.b16 %v423, %v419
    %v540 = vpack.c.b16 %v424, %v420
    %v541 = vpack.c.b16 %v425, %v421
    %v542 = vpack.c.b16 %v426, %v422
    %v543 = vpack.c.b16 %v431, %v427
    %v544 = vpack.c.b16 %v432, %v428
    %v545 = vpack.c.b16 %v433, %v429
    %v546 = vpack.c.b16 %v434, %v430
    %v547 = vpack.c.b16 %v439, %v435
    %v548 = vpack.c.b16 %v440, %v436
    %v549 = vpack.c.b16 %v441, %v437
    %v550 = vpack.c.b16 %v442, %v438
    %v551 = vpack.c.b16 %v447, %v443
    %v552 = vpack.c.b16 %v448, %v444
    %v553 = vpack.c.b16 %v449, %v445
    %v554 = vpack.c.b16 %v450, %v446
    %v555 = vpack.c.b16 %v455, %v451
    %v556 = vpack.c.b16 %v456, %v452
    %v557 = vpack.c.b16 %v457, %v453
    %v558 = vpack.c.b16 %v458, %v454
    %v559 = vpack.c.b16 %v463, %v459
    %v560 = vpack.c.b16 %v464, %v460
    %v561 = vpack.c.b16 %v465, %v461
    %v562 = vpack.c.b16 %v466, %v462
    %v563 = vpack.c.b16 %v471, %v467
    %v564 = vpack.c.b16 %v472, %v468
    %v565 = vpack.c.b16 %v473, %v469
    %v566 = vpack.c.b16 %v474, %v470
    %v567 = vpack.c.b16 %v479, %v475
    %v568 = vpack.c.b16 %v480, %v476
    %v569 = vpack.c.b16 %v481, %v477
    %v570 = vpack.c.b16 %v482, %v478
    %v571 = vpack.c.b16 %v487, %v483
    %v572 = vpack.c.b16 %v488, %v484
    %v573 = vpack.c.b16 %v489, %v485
    %v574 = vpack.c.b16 %v490, %v486
    %v575 = vpack.c.b16 %v495, %v491
    %v576 = vpack.c.b16 %v496, %v492
    %v577 = vpack.c.b16 %v497, %v493
    %v578 = vpack.c.b16 %v498, %v494
    %v579 = vpack.c.b16 %v503, %v499
    %v580 = vpack.c.b16 %v504, %v500
    %v581 = vpack.c.b16 %v505, %v501
    %v582 = vpack.c.b16 %v506, %v502
    %v583 = vpack.c.b16 %v511, %v507
    %v584 = vpack.c.b16 %v512, %v508
    %v585 = vpack.c.b16 %v513, %v509
    %v586 = vpack.c.b16 %v514, %v510
    %v587 = vpack.c.b16 %v519, %v515
    %v588 = vpack.c.b16 %v520, %v516
    %v589 = vpack.c.b16 %v521, %v517
    %v590 = vpack.c.b16 %v522, %v518
    %v591 = vpack.c.b16 %v527, %v523
    %v592 = vpack.c.b16 %v528, %v524
    %v593 = vpack.c.b16 %v529, %v525
    %v594 = vpack.c.b16 %v530, %v526
    %659 = vmatprep.subr.bf16.mxu0 %v560
    %660 = vmatpush1.bf16.msra.mxu0 %v559
    %661 = vmatprep.subr.bf16.mxu0 %v556
    %662 = vmatpush1.bf16.msra.mxu0 %v555
    %663 = vmatprep.subr.bf16.mxu0 %v552
    %664 = vmatpush1.bf16.msra.mxu0 %v551
    %665 = vmatprep.subr.bf16.mxu0 %v548
    %666 = vmatpush1.bf16.msra.mxu0 %v547
    %667 = vmatprep.subr.bf16.mxu0 %v544
    %668 = vmatpush1.bf16.msra.mxu0 %v543
    %669 = vmatprep.subr.bf16.mxu0 %v540
    %670 = vmatpush1.bf16.msra.mxu0 %v539
    %671 = vmatprep.subr.bf16.mxu0 %v536
    %672 = vmatpush1.bf16.msra.mxu0 %v535
    %673 = vmatprep.subr.bf16.mxu0 %v532
    %674 = vmatpush1.bf16.msra.mxu0 %v531
    %675 = vmatprep.subr.bf16.mxu0 %v592
    %676 = vmatpush2.bf16.msra.mxu0 %v591
    %677 = vmatprep.subr.bf16.mxu0 %v588
    %678 = vmatpush2.bf16.msra.mxu0 %v587
    %679 = vmatprep.subr.bf16.mxu0 %v584
    %680 = vmatpush2.bf16.msra.mxu0 %v583
    %681 = vmatprep.subr.bf16.mxu0 %v580
    %682 = vmatpush2.bf16.msra.mxu0 %v579
    %683 = vmatprep.subr.bf16.mxu0 %v576
    %684 = vmatpush2.bf16.msra.mxu0 %v575
    %685 = vmatprep.subr.bf16.mxu0 %v572
    %686 = vmatpush2.bf16.msra.mxu0 %v571
    %687 = vmatprep.subr.bf16.mxu0 %v568
    %688 = vmatpush2.bf16.msra.mxu0 %v567
    %689 = vmatprep.subr.bf16.mxu0 %v564
    %690 = vmatpush2.bf16.msra.mxu0 %v563
    %691 = vmatprep.mubr.bf16.mxu0 %v252
    %692 = vmatmul.mubr.bf16.gmra.mxu0 %v251
    %v693 = vpop.f32.mrf.mxu0
    %v694 = vadd.f32 %v322, %v693
    %v695 = vpop.f32.mrf.mxu0
    %v696 = vadd.f32 %v326, %v695
    %v697 = vpop.f32.mrf.mxu0
    %v698 = vadd.f32 %v322, %v697
    %v699 = vpop.f32.mrf.mxu0
    %v700 = vadd.f32 %v326, %v699
    %701 = vdwg.mxu0
    %702 = vmatprep.subr.bf16.mxu0 %v562
    %703 = vmatpush1.bf16.msra.mxu0 %v561
    %704 = vmatprep.subr.bf16.mxu0 %v558
    %705 = vmatpush1.bf16.msra.mxu0 %v557
    %706 = vmatprep.subr.bf16.mxu0 %v554
    %707 = vmatpush1.bf16.msra.mxu0 %v553
    %708 = vmatprep.subr.bf16.mxu0 %v550
    %709 = vmatpush1.bf16.msra.mxu0 %v549
    %710 = vmatprep.subr.bf16.mxu0 %v546
    %711 = vmatpush1.bf16.msra.mxu0 %v545
    %712 = vmatprep.subr.bf16.mxu0 %v542
    %713 = vmatpush1.bf16.msra.mxu0 %v541
    %714 = vmatprep.subr.bf16.mxu0 %v538
    %715 = vmatpush1.bf16.msra.mxu0 %v537
    %716 = vmatprep.subr.bf16.mxu0 %v534
    %717 = vmatpush1.bf16.msra.mxu0 %v533
    %718 = vmatprep.subr.bf16.mxu0 %v594
    %719 = vmatpush2.bf16.msra.mxu0 %v593
    %720 = vmatprep.subr.bf16.mxu0 %v590
    %721 = vmatpush2.bf16.msra.mxu0 %v589
    %722 = vmatprep.subr.bf16.mxu0 %v586
    %723 = vmatpush2.bf16.msra.mxu0 %v585
    %724 = vmatprep.subr.bf16.mxu0 %v582
    %725 = vmatpush2.bf16.msra.mxu0 %v581
    %726 = vmatprep.subr.bf16.mxu0 %v578
    %727 = vmatpush2.bf16.msra.mxu0 %v577
    %728 = vmatprep.subr.bf16.mxu0 %v574
    %729 = vmatpush2.bf16.msra.mxu0 %v573
    %730 = vmatprep.subr.bf16.mxu0 %v570
    %731 = vmatpush2.bf16.msra.mxu0 %v569
    %732 = vmatprep.subr.bf16.mxu0 %v566
    %733 = vmatpush2.bf16.msra.mxu0 %v565
    %734 = vmatprep.mubr.bf16.mxu0 %v252
    %735 = vmatmul.mubr.bf16.gmra.mxu0 %v251
    %v736 = vpop.f32.mrf.mxu0
    %v737 = vadd.f32 %v330, %v736
    %v738 = vpop.f32.mrf.mxu0
    %v739 = vadd.f32 %v334, %v738
    %v740 = vpop.f32.mrf.mxu0
    %v741 = vadd.f32 %v330, %v740
    %v742 = vpop.f32.mrf.mxu0
    %v743 = vadd.f32 %v334, %v742
    %744 = vdwg.mxu0
    %v745 = vmax.f32 %v694, 0.0
    %v746 = vmax.f32 %v696, 0.0
    %v747 = vmax.f32 %v737, 0.0
    %v748 = vmax.f32 %v739, 0.0
    %v749 = vmax.f32 %v698, 0.0
    %v750 = vmax.f32 %v700, 0.0
    %v751 = vmax.f32 %v741, 0.0
    %v752 = vmax.f32 %v743, 0.0
    %v753 = vpack.c.bf16 %v749, %v745
    %v754 = vpack.c.bf16 %v750, %v746
    %v755 = vpack.c.bf16 %v751, %v747
    %v756 = vpack.c.bf16 %v752, %v748
    %v757 = vld [vmem:[#allocation6] sm:$0xff]
    %v758 = vld [vmem:[#allocation6 + $0x8] sm:$0xff]
    %v759 = vld [vmem:[#allocation6 + $0x10] sm:$0xff]
    %v760 = vld [vmem:[#allocation6 + $0x18] sm:$0xff]
    %v761 = vld [vmem:[#allocation6 + $0x20] sm:$0xff]
    %v762 = vld [vmem:[#allocation6 + $0x28] sm:$0xff]
    %v763 = vld [vmem:[#allocation6 + $0x30] sm:$0xff]
    %v764 = vld [vmem:[#allocation6 + $0x38] sm:$0xff]
    %v765 = vld [vmem:[#allocation6 + $0x40] sm:$0xff]
    %v766 = vld [vmem:[#allocation6 + $0x48] sm:$0xff]
    %v767 = vld [vmem:[#allocation6 + $0x50] sm:$0xff]
    %v768 = vld [vmem:[#allocation6 + $0x58] sm:$0xff]
    %v769 = vld [vmem:[#allocation6 + $0x60] sm:$0xff]
    %v770 = vld [vmem:[#allocation6 + $0x68] sm:$0xff]
    %v771 = vld [vmem:[#allocation6 + $0x70] sm:$0xff]
    %v772 = vld [vmem:[#allocation6 + $0x78] sm:$0xff]
    %v773 = vld [vmem:[#allocation6 + $0x80] sm:$0xff]
    %v774 = vld [vmem:[#allocation6 + $0x88] sm:$0xff]
    %v775 = vld [vmem:[#allocation6 + $0x90] sm:$0xff]
    %v776 = vld [vmem:[#allocation6 + $0x98] sm:$0xff]
    %v777 = vld [vmem:[#allocation6 + $0xa0] sm:$0xff]
    %v778 = vld [vmem:[#allocation6 + $0xa8] sm:$0xff]
    %v779 = vld [vmem:[#allocation6 + $0xb0] sm:$0xff]
    %v780 = vld [vmem:[#allocation6 + $0xb8] sm:$0xff]
    %v781 = vld [vmem:[#allocation6 + $0xc0] sm:$0xff]
    %v782 = vld [vmem:[#allocation6 + $0xc8] sm:$0xff]
    %v783 = vld [vmem:[#allocation6 + $0xd0] sm:$0xff]
    %v784 = vld [vmem:[#allocation6 + $0xd8] sm:$0xff]
    %v785 = vld [vmem:[#allocation6 + $0xe0] sm:$0xff]
    %v786 = vld [vmem:[#allocation6 + $0xe8] sm:$0xff]
    %v787 = vld [vmem:[#allocation6 + $0xf0] sm:$0xff]
    %v788 = vld [vmem:[#allocation6 + $0xf8] sm:$0xff]
    %v789 = vld [vmem:[#allocation6 + $0x100] sm:$0xff]
    %v790 = vld [vmem:[#allocation6 + $0x108] sm:$0xff]
    %v791 = vld [vmem:[#allocation6 + $0x110] sm:$0xff]
    %v792 = vld [vmem:[#allocation6 + $0x118] sm:$0xff]
    %v793 = vld [vmem:[#allocation6 + $0x120] sm:$0xff]
    %v794 = vld [vmem:[#allocation6 + $0x128] sm:$0xff]
    %v795 = vld [vmem:[#allocation6 + $0x130] sm:$0xff]
    %v796 = vld [vmem:[#allocation6 + $0x138] sm:$0xff]
    %v797 = vld [vmem:[#allocation6 + $0x140] sm:$0xff]
    %v798 = vld [vmem:[#allocation6 + $0x148] sm:$0xff]
    %v799 = vld [vmem:[#allocation6 + $0x150] sm:$0xff]
    %v800 = vld [vmem:[#allocation6 + $0x158] sm:$0xff]
    %v801 = vld [vmem:[#allocation6 + $0x160] sm:$0xff]
    %v802 = vld [vmem:[#allocation6 + $0x168] sm:$0xff]
    %v803 = vld [vmem:[#allocation6 + $0x170] sm:$0xff]
    %v804 = vld [vmem:[#allocation6 + $0x178] sm:$0xff]
    %v805 = vld [vmem:[#allocation6 + $0x180] sm:$0xff]
    %v806 = vld [vmem:[#allocation6 + $0x188] sm:$0xff]
    %v807 = vld [vmem:[#allocation6 + $0x190] sm:$0xff]
    %v808 = vld [vmem:[#allocation6 + $0x198] sm:$0xff]
    %v809 = vld [vmem:[#allocation6 + $0x1a0] sm:$0xff]
    %v810 = vld [vmem:[#allocation6 + $0x1a8] sm:$0xff]
    %v811 = vld [vmem:[#allocation6 + $0x1b0] sm:$0xff]
    %v812 = vld [vmem:[#allocation6 + $0x1b8] sm:$0xff]
    %v813 = vld [vmem:[#allocation6 + $0x1c0] sm:$0xff]
    %v814 = vld [vmem:[#allocation6 + $0x1c8] sm:$0xff]
    %v815 = vld [vmem:[#allocation6 + $0x1d0] sm:$0xff]
    %v816 = vld [vmem:[#allocation6 + $0x1d8] sm:$0xff]
    %v817 = vld [vmem:[#allocation6 + $0x1e0] sm:$0xff]
    %v818 = vld [vmem:[#allocation6 + $0x1e8] sm:$0xff]
    %v819 = vld [vmem:[#allocation6 + $0x1f0] sm:$0xff]
    %v820 = vld [vmem:[#allocation6 + $0x1f8] sm:$0xff]
    %v821 = vld [vmem:[%s6] sm:$0x3]
    %v823 = vlaneseq
    %v824 = vshrl.u32 %v823, 7
    %v825 = vsub.s32 0, %v824
    %v826 = vrot.slane %v821, %v825
    %v827 = vlaneseq
    %v828 = vshrl.u32 %v827, 7
    %v829 = vsub.s32 1, %v828
    %v830 = vrot.slane %v821, %v829
    %v897 = vunpack.c.l.b16 %v757
    %v898 = vunpack.c.h.b16 %v757
    %v899 = vunpack.c.l.b16 %v758
    %v900 = vunpack.c.h.b16 %v758
    %v901 = vunpack.c.l.b16 %v759
    %v902 = vunpack.c.h.b16 %v759
    %v903 = vunpack.c.l.b16 %v760
    %v904 = vunpack.c.h.b16 %v760
    %v905 = vunpack.c.l.b16 %v761
    %v906 = vunpack.c.h.b16 %v761
    %v907 = vunpack.c.l.b16 %v762
    %v908 = vunpack.c.h.b16 %v762
    %v909 = vunpack.c.l.b16 %v763
    %v910 = vunpack.c.h.b16 %v763
    %v911 = vunpack.c.l.b16 %v764
    %v912 = vunpack.c.h.b16 %v764
    %v913 = vunpack.c.l.b16 %v765
    %v914 = vunpack.c.h.b16 %v765
    %v915 = vunpack.c.l.b16 %v766
    %v916 = vunpack.c.h.b16 %v766
    %v917 = vunpack.c.l.b16 %v767
    %v918 = vunpack.c.h.b16 %v767
    %v919 = vunpack.c.l.b16 %v768
    %v920 = vunpack.c.h.b16 %v768
    %v921 = vunpack.c.l.b16 %v769
    %v922 = vunpack.c.h.b16 %v769
    %v923 = vunpack.c.l.b16 %v770
    %v924 = vunpack.c.h.b16 %v770
    %v925 = vunpack.c.l.b16 %v771
    %v926 = vunpack.c.h.b16 %v771
    %v927 = vunpack.c.l.b16 %v772
    %v928 = vunpack.c.h.b16 %v772
    %v929 = vunpack.c.l.b16 %v773
    %v930 = vunpack.c.h.b16 %v773
    %v931 = vunpack.c.l.b16 %v774
    %v932 = vunpack.c.h.b16 %v774
    %v933 = vunpack.c.l.b16 %v775
    %v934 = vunpack.c.h.b16 %v775
    %v935 = vunpack.c.l.b16 %v776
    %v936 = vunpack.c.h.b16 %v776
    %v937 = vunpack.c.l.b16 %v777
    %v938 = vunpack.c.h.b16 %v777
    %v939 = vunpack.c.l.b16 %v778
    %v940 = vunpack.c.h.b16 %v778
    %v941 = vunpack.c.l.b16 %v779
    %v942 = vunpack.c.h.b16 %v779
    %v943 = vunpack.c.l.b16 %v780
    %v944 = vunpack.c.h.b16 %v780
    %v945 = vunpack.c.l.b16 %v781
    %v946 = vunpack.c.h.b16 %v781
    %v947 = vunpack.c.l.b16 %v782
    %v948 = vunpack.c.h.b16 %v782
    %v949 = vunpack.c.l.b16 %v783
    %v950 = vunpack.c.h.b16 %v783
    %v951 = vunpack.c.l.b16 %v784
    %v952 = vunpack.c.h.b16 %v784
    %v953 = vunpack.c.l.b16 %v785
    %v954 = vunpack.c.h.b16 %v785
    %v955 = vunpack.c.l.b16 %v786
    %v956 = vunpack.c.h.b16 %v786
    %v957 = vunpack.c.l.b16 %v787
    %v958 = vunpack.c.h.b16 %v787
    %v959 = vunpack.c.l.b16 %v788
    %v960 = vunpack.c.h.b16 %v788
    %v961 = vunpack.c.l.b16 %v789
    %v962 = vunpack.c.h.b16 %v789
    %v963 = vunpack.c.l.b16 %v790
    %v964 = vunpack.c.h.b16 %v790
    %v965 = vunpack.c.l.b16 %v791
    %v966 = vunpack.c.h.b16 %v791
    %v967 = vunpack.c.l.b16 %v792
    %v968 = vunpack.c.h.b16 %v792
    %v969 = vunpack.c.l.b16 %v793
    %v970 = vunpack.c.h.b16 %v793
    %v971 = vunpack.c.l.b16 %v794
    %v972 = vunpack.c.h.b16 %v794
    %v973 = vunpack.c.l.b16 %v795
    %v974 = vunpack.c.h.b16 %v795
    %v975 = vunpack.c.l.b16 %v796
    %v976 = vunpack.c.h.b16 %v796
    %v977 = vunpack.c.l.b16 %v797
    %v978 = vunpack.c.h.b16 %v797
    %v979 = vunpack.c.l.b16 %v798
    %v980 = vunpack.c.h.b16 %v798
    %v981 = vunpack.c.l.b16 %v799
    %v982 = vunpack.c.h.b16 %v799
    %v983 = vunpack.c.l.b16 %v800
    %v984 = vunpack.c.h.b16 %v800
    %v985 = vunpack.c.l.b16 %v801
    %v986 = vunpack.c.h.b16 %v801
    %v987 = vunpack.c.l.b16 %v802
    %v988 = vunpack.c.h.b16 %v802
    %v989 = vunpack.c.l.b16 %v803
    %v990 = vunpack.c.h.b16 %v803
    %v991 = vunpack.c.l.b16 %v804
    %v992 = vunpack.c.h.b16 %v804
    %v993 = vunpack.c.l.b16 %v805
    %v994 = vunpack.c.h.b16 %v805
    %v995 = vunpack.c.l.b16 %v806
    %v996 = vunpack.c.h.b16 %v806
    %v997 = vunpack.c.l.b16 %v807
    %v998 = vunpack.c.h.b16 %v807
    %v999 = vunpack.c.l.b16 %v808
    %v1000 = vunpack.c.h.b16 %v808
    %v1001 = vunpack.c.l.b16 %v809
    %v1002 = vunpack.c.h.b16 %v809
    %v1003 = vunpack.c.l.b16 %v810
    %v1004 = vunpack.c.h.b16 %v810
    %v1005 = vunpack.c.l.b16 %v811
    %v1006 = vunpack.c.h.b16 %v811
    %v1007 = vunpack.c.l.b16 %v812
    %v1008 = vunpack.c.h.b16 %v812
    %v1009 = vunpack.c.l.b16 %v813
    %v1010 = vunpack.c.h.b16 %v813
    %v1011 = vunpack.c.l.b16 %v814
    %v1012 = vunpack.c.h.b16 %v814
    %v1013 = vunpack.c.l.b16 %v815
    %v1014 = vunpack.c.h.b16 %v815
    %v1015 = vunpack.c.l.b16 %v816
    %v1016 = vunpack.c.h.b16 %v816
    %v1017 = vunpack.c.l.b16 %v817
    %v1018 = vunpack.c.h.b16 %v817
    %v1019 = vunpack.c.l.b16 %v818
    %v1020 = vunpack.c.h.b16 %v818
    %v1021 = vunpack.c.l.b16 %v819
    %v1022 = vunpack.c.h.b16 %v819
    %v1023 = vunpack.c.l.b16 %v820
    %v1024 = vunpack.c.h.b16 %v820
    %v1025 = vpack.c.b16 %v899, %v897
    %v1026 = vpack.c.b16 %v900, %v898
    %v1027 = vpack.c.b16 %v903, %v901
    %v1028 = vpack.c.b16 %v904, %v902
    %v1029 = vpack.c.b16 %v907, %v905
    %v1030 = vpack.c.b16 %v908, %v906
    %v1031 = vpack.c.b16 %v911, %v909
    %v1032 = vpack.c.b16 %v912, %v910
    %v1033 = vpack.c.b16 %v915, %v913
    %v1034 = vpack.c.b16 %v916, %v914
    %v1035 = vpack.c.b16 %v919, %v917
    %v1036 = vpack.c.b16 %v920, %v918
    %v1037 = vpack.c.b16 %v923, %v921
    %v1038 = vpack.c.b16 %v924, %v922
    %v1039 = vpack.c.b16 %v927, %v925
    %v1040 = vpack.c.b16 %v928, %v926
    %v1041 = vpack.c.b16 %v931, %v929
    %v1042 = vpack.c.b16 %v932, %v930
    %v1043 = vpack.c.b16 %v935, %v933
    %v1044 = vpack.c.b16 %v936, %v934
    %v1045 = vpack.c.b16 %v939, %v937
    %v1046 = vpack.c.b16 %v940, %v938
    %v1047 = vpack.c.b16 %v943, %v941
    %v1048 = vpack.c.b16 %v944, %v942
    %v1049 = vpack.c.b16 %v947, %v945
    %v1050 = vpack.c.b16 %v948, %v946
    %v1051 = vpack.c.b16 %v951, %v949
    %v1052 = vpack.c.b16 %v952, %v950
    %v1053 = vpack.c.b16 %v955, %v953
    %v1054 = vpack.c.b16 %v956, %v954
    %v1055 = vpack.c.b16 %v959, %v957
    %v1056 = vpack.c.b16 %v960, %v958
    %v1057 = vpack.c.b16 %v963, %v961
    %v1058 = vpack.c.b16 %v964, %v962
    %v1059 = vpack.c.b16 %v967, %v965
    %v1060 = vpack.c.b16 %v968, %v966
    %v1061 = vpack.c.b16 %v971, %v969
    %v1062 = vpack.c.b16 %v972, %v970
    %v1063 = vpack.c.b16 %v975, %v973
    %v1064 = vpack.c.b16 %v976, %v974
    %v1065 = vpack.c.b16 %v979, %v977
    %v1066 = vpack.c.b16 %v980, %v978
    %v1067 = vpack.c.b16 %v983, %v981
    %v1068 = vpack.c.b16 %v984, %v982
    %v1069 = vpack.c.b16 %v987, %v985
    %v1070 = vpack.c.b16 %v988, %v986
    %v1071 = vpack.c.b16 %v991, %v989
    %v1072 = vpack.c.b16 %v992, %v990
    %v1073 = vpack.c.b16 %v995, %v993
    %v1074 = vpack.c.b16 %v996, %v994
    %v1075 = vpack.c.b16 %v999, %v997
    %v1076 = vpack.c.b16 %v1000, %v998
    %v1077 = vpack.c.b16 %v1003, %v1001
    %v1078 = vpack.c.b16 %v1004, %v1002
    %v1079 = vpack.c.b16 %v1007, %v1005
    %v1080 = vpack.c.b16 %v1008, %v1006
    %v1081 = vpack.c.b16 %v1011, %v1009
    %v1082 = vpack.c.b16 %v1012, %v1010
    %v1083 = vpack.c.b16 %v1015, %v1013
    %v1084 = vpack.c.b16 %v1016, %v1014
    %v1085 = vpack.c.b16 %v1019, %v1017
    %v1086 = vpack.c.b16 %v1020, %v1018
    %v1087 = vpack.c.b16 %v1023, %v1021
    %v1088 = vpack.c.b16 %v1024, %v1022
    %1153 = vmatprep.subr.bf16.mxu0 %v1040
    %1154 = vmatpush1.bf16.msra.mxu0 %v1039
    %1155 = vmatprep.subr.bf16.mxu0 %v1038
    %1156 = vmatpush1.bf16.msra.mxu0 %v1037
    %1157 = vmatprep.subr.bf16.mxu0 %v1036
    %1158 = vmatpush1.bf16.msra.mxu0 %v1035
    %1159 = vmatprep.subr.bf16.mxu0 %v1034
    %1160 = vmatpush1.bf16.msra.mxu0 %v1033
    %1161 = vmatprep.subr.bf16.mxu0 %v1032
    %1162 = vmatpush1.bf16.msra.mxu0 %v1031
    %1163 = vmatprep.subr.bf16.mxu0 %v1030
    %1164 = vmatpush1.bf16.msra.mxu0 %v1029
    %1165 = vmatprep.subr.bf16.mxu0 %v1028
    %1166 = vmatpush1.bf16.msra.mxu0 %v1027
    %1167 = vmatprep.subr.bf16.mxu0 %v1026
    %1168 = vmatpush1.bf16.msra.mxu0 %v1025
    %1169 = vmatprep.subr.bf16.mxu0 %v1056
    %1170 = vmatpush2.bf16.msra.mxu0 %v1055
    %1171 = vmatprep.subr.bf16.mxu0 %v1054
    %1172 = vmatpush2.bf16.msra.mxu0 %v1053
    %1173 = vmatprep.subr.bf16.mxu0 %v1052
    %1174 = vmatpush2.bf16.msra.mxu0 %v1051
    %1175 = vmatprep.subr.bf16.mxu0 %v1050
    %1176 = vmatpush2.bf16.msra.mxu0 %v1049
    %1177 = vmatprep.subr.bf16.mxu0 %v1048
    %1178 = vmatpush2.bf16.msra.mxu0 %v1047
    %1179 = vmatprep.subr.bf16.mxu0 %v1046
    %1180 = vmatpush2.bf16.msra.mxu0 %v1045
    %1181 = vmatprep.subr.bf16.mxu0 %v1044
    %1182 = vmatpush2.bf16.msra.mxu0 %v1043
    %1183 = vmatprep.subr.bf16.mxu0 %v1042
    %1184 = vmatpush2.bf16.msra.mxu0 %v1041
    %1185 = vmatprep.mubr.bf16.mxu0 %v754
    %1186 = vmatmul.mubr.bf16.gmra.mxu0 %v753
    %v1187 = vpop.f32.mrf.mxu0
    %v1188 = vadd.f32 %v826, %v1187
    %v1189 = vpop.f32.mrf.mxu0
    %v1190 = vadd.f32 %v830, %v1189
    %v1191 = vpop.f32.mrf.mxu0
    %v1192 = vadd.f32 %v826, %v1191
    %v1193 = vpop.f32.mrf.mxu0
    %v1194 = vadd.f32 %v830, %v1193
    %1195 = vdwg.mxu0
    %1196 = vmatprep.subr.bf16.mxu0 %v1072
    %1197 = vmatpush1.bf16.msra.mxu0 %v1071
    %1198 = vmatprep.subr.bf16.mxu0 %v1070
    %1199 = vmatpush1.bf16.msra.mxu0 %v1069
    %1200 = vmatprep.subr.bf16.mxu0 %v1068
    %1201 = vmatpush1.bf16.msra.mxu0 %v1067
    %1202 = vmatprep.subr.bf16.mxu0 %v1066
    %1203 = vmatpush1.bf16.msra.mxu0 %v1065
    %1204 = vmatprep.subr.bf16.mxu0 %v1064
    %1205 = vmatpush1.bf16.msra.mxu0 %v1063
    %1206 = vmatprep.subr.bf16.mxu0 %v1062
    %1207 = vmatpush1.bf16.msra.mxu0 %v1061
    %1208 = vmatprep.subr.bf16.mxu0 %v1060
    %1209 = vmatpush1.bf16.msra.mxu0 %v1059
    %1210 = vmatprep.subr.bf16.mxu0 %v1058
    %1211 = vmatpush1.bf16.msra.mxu0 %v1057
    %1212 = vmatprep.subr.bf16.mxu0 %v1088
    %1213 = vmatpush2.bf16.msra.mxu0 %v1087
    %1214 = vmatprep.subr.bf16.mxu0 %v1086
    %1215 = vmatpush2.bf16.msra.mxu0 %v1085
    %1216 = vmatprep.subr.bf16.mxu0 %v1084
    %1217 = vmatpush2.bf16.msra.mxu0 %v1083
    %1218 = vmatprep.subr.bf16.mxu0 %v1082
    %1219 = vmatpush2.bf16.msra.mxu0 %v1081
    %1220 = vmatprep.subr.bf16.mxu0 %v1080
    %1221 = vmatpush2.bf16.msra.mxu0 %v1079
    %1222 = vmatprep.subr.bf16.mxu0 %v1078
    %1223 = vmatpush2.bf16.msra.mxu0 %v1077
    %1224 = vmatprep.subr.bf16.mxu0 %v1076
    %1225 = vmatpush2.bf16.msra.mxu0 %v1075
    %1226 = vmatprep.subr.bf16.mxu0 %v1074
    %1227 = vmatpush2.bf16.msra.mxu0 %v1073
    %1228 = vmatprep.mubr.bf16.mxu0 %v756
    %1229 = vmatmul.mubr.bf16.gmra.mxu0 %v755
    %v1230 = vpop.f32.mrf.mxu0
    %v1231 = vadd.f32 %v1188, %v1230
    %v1232 = vpop.f32.mrf.mxu0
    %v1233 = vadd.f32 %v1190, %v1232
    %v1234 = vpop.f32.mrf.mxu0
    %v1235 = vadd.f32 %v1192, %v1234
    %v1236 = vpop.f32.mrf.mxu0
    %v1237 = vadd.f32 %v1194, %v1236
    %1238 = vdwg.mxu0
    %v1239 = vmax.f32 %v1231, 0.0
    %v1240 = vmax.f32 %v1233, 0.0
    %v1241 = vmax.f32 %v1235, 0.0
    %v1242 = vmax.f32 %v1237, 0.0
    %v1243 = vpack.c.bf16 %v1241, %v1239
    %v1244 = vpack.c.bf16 %v1242, %v1240
    %v1245 = vld [vmem:[#allocation7] sm:$0xf]
    %v1246 = vld [vmem:[#allocation7 + $0x4] sm:$0xf]
    %v1247 = vld [vmem:[#allocation7 + $0x8] sm:$0xf]
    %v1248 = vld [vmem:[#allocation7 + $0xc] sm:$0xf]
    %v1249 = vld [vmem:[#allocation7 + $0x10] sm:$0xf]
    %v1250 = vld [vmem:[#allocation7 + $0x14] sm:$0xf]
    %v1251 = vld [vmem:[#allocation7 + $0x18] sm:$0xf]
    %v1252 = vld [vmem:[#allocation7 + $0x1c] sm:$0xf]
    %v1253 = vld [vmem:[#allocation7 + $0x20] sm:$0xf]
    %v1254 = vld [vmem:[#allocation7 + $0x24] sm:$0xf]
    %v1255 = vld [vmem:[#allocation7 + $0x28] sm:$0xf]
    %v1256 = vld [vmem:[#allocation7 + $0x2c] sm:$0xf]
    %v1257 = vld [vmem:[#allocation7 + $0x30] sm:$0xf]
    %v1258 = vld [vmem:[#allocation7 + $0x34] sm:$0xf]
    %v1259 = vld [vmem:[#allocation7 + $0x38] sm:$0xf]
    %v1260 = vld [vmem:[#allocation7 + $0x3c] sm:$0xf]
    %v1261 = vld [vmem:[#allocation7 + $0x40] sm:$0xf]
    %v1262 = vld [vmem:[#allocation7 + $0x44] sm:$0xf]
    %v1263 = vld [vmem:[#allocation7 + $0x48] sm:$0xf]
    %v1264 = vld [vmem:[#allocation7 + $0x4c] sm:$0xf]
    %v1265 = vld [vmem:[#allocation7 + $0x50] sm:$0xf]
    %v1266 = vld [vmem:[#allocation7 + $0x54] sm:$0xf]
    %v1267 = vld [vmem:[#allocation7 + $0x58] sm:$0xf]
    %v1268 = vld [vmem:[#allocation7 + $0x5c] sm:$0xf]
    %v1269 = vld [vmem:[#allocation7 + $0x60] sm:$0xf]
    %v1270 = vld [vmem:[#allocation7 + $0x64] sm:$0xf]
    %v1271 = vld [vmem:[#allocation7 + $0x68] sm:$0xf]
    %v1272 = vld [vmem:[#allocation7 + $0x6c] sm:$0xf]
    %v1273 = vld [vmem:[#allocation7 + $0x70] sm:$0xf]
    %v1274 = vld [vmem:[#allocation7 + $0x74] sm:$0xf]
    %v1275 = vld [vmem:[#allocation7 + $0x78] sm:$0xf]
    %v1276 = vld [vmem:[#allocation7 + $0x7c] sm:$0xf]
    %v1277 = vld [vmem:[%s8] sm:$0x1]
    %v1279 = vlaneseq
    %v1280 = vshrl.u32 %v1279, 7
    %v1281 = vsub.s32 0, %v1280
    %v1282 = vrot.slane %v1277, %v1281
    %v1316 = vunpack.c.l.b16 %v1245
    %v1317 = vunpack.c.l.b16 %v1246
    %v1318 = vunpack.c.l.b16 %v1247
    %v1319 = vunpack.c.l.b16 %v1248
    %v1320 = vunpack.c.l.b16 %v1249
    %v1321 = vunpack.c.l.b16 %v1250
    %v1322 = vunpack.c.l.b16 %v1251
    %v1323 = vunpack.c.l.b16 %v1252
    %v1324 = vunpack.c.l.b16 %v1253
    %v1325 = vunpack.c.l.b16 %v1254
    %v1326 = vunpack.c.l.b16 %v1255
    %v1327 = vunpack.c.l.b16 %v1256
    %v1328 = vunpack.c.l.b16 %v1257
    %v1329 = vunpack.c.l.b16 %v1258
    %v1330 = vunpack.c.l.b16 %v1259
    %v1331 = vunpack.c.l.b16 %v1260
    %v1332 = vunpack.c.l.b16 %v1261
    %v1333 = vunpack.c.l.b16 %v1262
    %v1334 = vunpack.c.l.b16 %v1263
    %v1335 = vunpack.c.l.b16 %v1264
    %v1336 = vunpack.c.l.b16 %v1265
    %v1337 = vunpack.c.l.b16 %v1266
    %v1338 = vunpack.c.l.b16 %v1267
    %v1339 = vunpack.c.l.b16 %v1268
    %v1340 = vunpack.c.l.b16 %v1269
    %v1341 = vunpack.c.l.b16 %v1270
    %v1342 = vunpack.c.l.b16 %v1271
    %v1343 = vunpack.c.l.b16 %v1272
    %v1344 = vunpack.c.l.b16 %v1273
    %v1345 = vunpack.c.l.b16 %v1274
    %v1346 = vunpack.c.l.b16 %v1275
    %v1347 = vunpack.c.l.b16 %v1276
    %v1348 = vpack.c.b16 %v1317, %v1316
    %v1349 = vpack.c.b16 %v1319, %v1318
    %v1350 = vpack.c.b16 %v1321, %v1320
    %v1351 = vpack.c.b16 %v1323, %v1322
    %v1352 = vpack.c.b16 %v1325, %v1324
    %v1353 = vpack.c.b16 %v1327, %v1326
    %v1354 = vpack.c.b16 %v1329, %v1328
    %v1355 = vpack.c.b16 %v1331, %v1330
    %v1356 = vpack.c.b16 %v1333, %v1332
    %v1357 = vpack.c.b16 %v1335, %v1334
    %v1358 = vpack.c.b16 %v1337, %v1336
    %v1359 = vpack.c.b16 %v1339, %v1338
    %v1360 = vpack.c.b16 %v1341, %v1340
    %v1361 = vpack.c.b16 %v1343, %v1342
    %v1362 = vpack.c.b16 %v1345, %v1344
    %v1363 = vpack.c.b16 %v1347, %v1346
    %1380 = vmatprep.subr.bf16.mxu0 0
    %1381 = vmatpush1.bf16.msra.mxu0 %v1355
    %1382 = vmatprep.subr.bf16.mxu0 0
    %1383 = vmatpush1.bf16.msra.mxu0 %v1354
    %1384 = vmatprep.subr.bf16.mxu0 0
    %1385 = vmatpush1.bf16.msra.mxu0 %v1353
    %1386 = vmatprep.subr.bf16.mxu0 0
    %1387 = vmatpush1.bf16.msra.mxu0 %v1352
    %1388 = vmatprep.subr.bf16.mxu0 0
    %1389 = vmatpush1.bf16.msra.mxu0 %v1351
    %1390 = vmatprep.subr.bf16.mxu0 0
    %1391 = vmatpush1.bf16.msra.mxu0 %v1350
    %1392 = vmatprep.subr.bf16.mxu0 0
    %1393 = vmatpush1.bf16.msra.mxu0 %v1349
    %1394 = vmatprep.subr.bf16.mxu0 0
    %1395 = vmatpush1.bf16.msra.mxu0 %v1348
    %1396 = vmatprep.subr.bf16.mxu0 0
    %1397 = vmatpush2.bf16.msra.mxu0 %v1363
    %1398 = vmatprep.subr.bf16.mxu0 0
    %1399 = vmatpush2.bf16.msra.mxu0 %v1362
    %1400 = vmatprep.subr.bf16.mxu0 0
    %1401 = vmatpush2.bf16.msra.mxu0 %v1361
    %1402 = vmatprep.subr.bf16.mxu0 0
    %1403 = vmatpush2.bf16.msra.mxu0 %v1360
    %1404 = vmatprep.subr.bf16.mxu0 0
    %1405 = vmatpush2.bf16.msra.mxu0 %v1359
    %1406 = vmatprep.subr.bf16.mxu0 0
    %1407 = vmatpush2.bf16.msra.mxu0 %v1358
    %1408 = vmatprep.subr.bf16.mxu0 0
    %1409 = vmatpush2.bf16.msra.mxu0 %v1357
    %1410 = vmatprep.subr.bf16.mxu0 0
    %1411 = vmatpush2.bf16.msra.mxu0 %v1356
    %1412 = vmatprep.mubr.bf16.mxu0 %v1244
    %1413 = vmatmul.mubr.bf16.gmra.mxu0 %v1243
    %v1414 = vpop.f32.mrf.mxu0
    %v1415 = vadd.f32 %v1282, %v1414
    %v1416 = vpop.f32.mrf.mxu0
    %v1417 = vpop.f32.mrf.mxu0
    %v1418 = vadd.f32 %v1282, %v1417
    %v1419 = vpop.f32.mrf.mxu0
    %1420 = vdwg.mxu0
    %v1421 = vxor.u32 %v1415, 2147483648
    %v1422 = vxor.u32 %v1418, 2147483648
    %v1423 = vmul.f32 %v1421, 1.442695
    %v1424 = vpow.pop %v1423
    %v1425 = vmul.f32 %v1422, 1.442695
    %v1426 = vpow.pop %v1425
    %v1427 = vadd.f32 %v1424, 1.0
    %v1428 = vadd.f32 %v1426, 1.0
    %v1429 = vrcp.pop %v1427
    %v1430 = vmul.f32 1.0, %v1429
    %v1431 = vrcp.pop %v1428
    %v1432 = vmul.f32 1.0, %v1431
    %1433 = vst [vmem:[%s9] sm:$0xff] %v1430
    %1434 = vst [vmem:[%s9 + $0x8] sm:$0xff] %v1432
    // Predicated region
    $region54: #{_net_forward_impl.1} parent=1 // pred_check
      _
    $region55: #{_net_forward_impl.1} parent=1 // pred_check_branch
      %1436 = sbr.rel (0) target = $region57
    $region56: #{_net_forward_impl.1} parent=1 // pred_region
      _
    $region57: #{_net_forward_impl.1} parent=1 // pred_fallthru
      _
    // Predicated region
    $region58: #{_net_forward_impl.1} parent=1 // pred_check
      _
    $region59: #{_net_forward_impl.1} parent=1 // pred_check_branch
      %1438 = sbr.rel (0) target = $region61
    $region60: #{_net_forward_impl.1} parent=1 // pred_region
      _
    $region61: #{_net_forward_impl.1} parent=1 // pred_fallthru
      _
    %1439 = vsyncpa [#allocation3], 1
    %1440 = vsyncpa [#allocation5], 1
    %1441 = vsyncpa [#allocation8], 1

</llo_original>
